<compile_context>
chip_gen: v6e
topology: v6e:2x2x1
jax: 0.10.0
libtpu: 0.0.40
codegen_flags: <defaults>
</compile_context>

<pallas_src>
import functools

import jax
import jax.numpy as jnp
import numpy as np
from jax.experimental import pallas as pl
from jax.experimental.pallas import tpu as pltpu

BN_EPS = 1e-5

# Architecture constants (fixed by the nn.Module: 5x5 spatial, 16/32/32 chans).
_L1_OUT, _L2_OUT, _L3_OUT = 256, 384, 128   # lane-padded flat widths per layer
_L2_REAL = 288                              # 32 ch * 3*3 (real width of layer 2)
_S1, _S2, _S3 = 16, 9, 4                    # spatial size per channel per layer
_PD_ROWS = _L1_OUT + _L2_OUT + _L3_OUT      # 768
_HID = 512                                  # merged fc1 | commfc1 width


def _vmem_spec():
    return pl.BlockSpec(memory_space=pltpu.MemorySpace.VMEM)


def _smem_spec():
    return pl.BlockSpec(memory_space=pltpu.MemorySpace.SMEM)


# ----------------------------------------------------------------------------
# Fused kernel.
#   x_ref    : (Bp, in_flat_pad) f32   zero-padded NCHW-flattened input
#   w1_ref   : (in_flat_pad, 256) bf16 dense conv1 matrix
#   w2_ref   : (256, 384) bf16         dense conv2 matrix (cols 288:384 zero)
#   w3_ref   : (896, OW) bf16          rows 0:384 = conv3 matrix (cols 0:128),
#                                      rows 384:896 = block-diag [fc2 ; commfc2]
#   wcat_ref : (128, 512) bf16         [fc1 | commfc1]
#   pd_ref   : (768, 32) bf16          pool-down (0/1) for BN stats, per layer
#   bu_ref   : (32, 768) bf16          broadcast-up (0/1), per layer
#   rows_ref : (8, max(512,OW)) f32    [g1,be1,g2,be2,g3,be3,bcat,bcomb]
#   sc_ref   : (1, 4) f32 SMEM         [comm_size, 1/B, B_valid, 0]
#   out_ref  : (Bp, OW) f32            lanes [0,A)=softmax, lane A=comm, rest 0
# ----------------------------------------------------------------------------
def actor_fused_kernel(action_size,
                       x_ref, w1_ref, w2_ref, w3_ref, wcat_ref,
                       pd_ref, bu_ref, rows_ref, sc_ref, out_ref):
    b_pad = x_ref.shape[0]
    out_w = out_ref.shape[1]

    comm_size = sc_ref[0, 0]
    inv_b = sc_ref[0, 1]
    n_valid = sc_ref[0, 2]

    row_idx = jax.lax.broadcasted_iota(jnp.int32, (b_pad, 1), 0).astype(jnp.float32)
    row_mask = row_idx < n_valid                      # valid-batch rows

    def conv_bn_relu(x, w_bf16, pd, bu, g, be, inv_spatial):
        # Conv as bf16 matmul, f32 accumulate. No conv bias: it cancels in BN.
        y = jnp.dot(x.astype(jnp.bfloat16), w_bf16,
                    preferred_element_type=jnp.float32)            # (Bp, F) f32
        # BatchNorm2d training-mode batch stats over (N, H, W), all in f32.
        sums = jnp.concatenate(
            [jnp.sum(y, axis=0, keepdims=True),
             jnp.sum(y * y, axis=0, keepdims=True)], axis=0)       # (2, F)
        pooled = jnp.dot(sums, pd.astype(jnp.float32),
                         preferred_element_type=jnp.float32)       # (2, 32)
        pooled = pooled * (inv_b * inv_spatial)                    # E[y], E[y^2]
        stats = jnp.dot(pooled, bu.astype(jnp.float32),
                        preferred_element_type=jnp.float32)        # (2, F)
        mu = stats[0:1, :]
        var = jnp.maximum(stats[1:2, :] - mu * mu, 0.0)
        y = (y - mu) * jax.lax.rsqrt(var + BN_EPS)
        y = jnp.maximum(y * g + be, 0.0)
        # Zero the batch-pad rows so they never pollute the next layer's stats.
        return jnp.where(row_mask, y, 0.0)

    x = x_ref[...]                                                 # (Bp, 128) f32
    x = conv_bn_relu(x, w1_ref[...],
                     pd_ref[0:256, :], bu_ref[:, 0:256],
                     rows_ref[0:1, 0:256], rows_ref[1:2, 0:256], 1.0 / _S1)
    x = conv_bn_relu(x, w2_ref[...],
                     pd_ref[256:640, :], bu_ref[:, 256:640],
                     rows_ref[2:3, 0:384], rows_ref[3:4, 0:384], 1.0 / _S2)
    x = conv_bn_relu(x, w3_ref[0:384, 0:128],
                     pd_ref[640:768, :], bu_ref[:, 640:768],
                     rows_ref[4:5, 0:128], rows_ref[5:6, 0:128], 1.0 / _S3)
    # x: (Bp, 128), already in PyTorch (C, H, W) flatten order.

    # Merged first head layer: [relu(fc1) | relu(commfc1)] -> (Bp, 512)
    h = jnp.maximum(
        jnp.dot(x.astype(jnp.bfloat16), wcat_ref[...],
                preferred_element_type=jnp.float32) + rows_ref[6:7, 0:512], 0.0)
    # Block-diag second head layer: cols [0,A)=logits, col A=comm pre-activation.
    z = (jnp.dot(h.astype(jnp.bfloat16), w3_ref[384:896, :],
                 preferred_element_type=jnp.float32) + rows_ref[7:8, 0:out_w])

    col = jax.lax.broadcasted_iota(jnp.int32, (b_pad, out_w), 1)
    is_act = col < action_size

    # Masked softmax over the action lanes, exact normalization (f32 divide).
    m = jnp.max(jnp.where(is_act, z, -jnp.inf), axis=-1, keepdims=True)
    e = jnp.where(is_act, jnp.exp(z - m), 0.0)
    inv_s = 1.0 / jnp.sum(e, axis=-1, keepdims=True)
    act = e * inv_s

    # Comm head: comm_size * sigmoid(relu(z)).
    c = jnp.maximum(z, 0.0)
    comm = comm_size * pl.reciprocal(1.0 + jnp.exp(-c), approx=True)

    out_ref[...] = jnp.where(is_act, act, jnp.where(col == action_size, comm, 0.0))


# ----------------------------------------------------------------------------
# Host-side (one-time) parameter preparation.
# ----------------------------------------------------------------------------
def _conv2x2_dense(w, H, W):
    """(Cout, Cin, 2, 2) conv weight -> dense (Cin*H*W, Cout*Ho*Wo) matrix such
    that  nchw_flat(x) @ M == nchw_flat(conv2d(x, w, valid))."""
    w = np.asarray(w, dtype=np.float32)
    cout, cin, kh, kw = w.shape
    ho, wo = H - kh + 1, W - kw + 1
    m = np.zeros((cin * H * W, cout * ho * wo), dtype=np.float32)
    for co in range(cout):
        for ci in range(cin):
            for di in range(kh):
                for dj in range(kw):
                    val = w[co, ci, di, dj]
                    for oi in range(ho):
                        for oj in range(wo):
                            row = ci * H * W + (oi + di) * W + (oj + dj)
                            col = co * ho * wo + oi * wo + oj
                            m[row, col] = val
    return m


def _pad2(arr, rows, cols):
    out = np.zeros((rows, cols), dtype=np.float32)
    out[:arr.shape[0], :arr.shape[1]] = arr
    return out


def prepare_fused_params(params, state_size, action_size):
    c_in, h, w = state_size
    assert (h, w) == (5, 5), "Actor's fc1(128) requires 5x5 spatial input"
    a = int(action_size)
    ow = ((a + 1 + 127) // 128) * 128

    in_flat = c_in * 25
    in_flat_pad = ((in_flat + 127) // 128) * 128

    # Dense conv matrices, lane-padded (pad rows/cols are zero).
    m1 = _pad2(_conv2x2_dense(params["conv1_w"], 5, 5), in_flat_pad, _L1_OUT)
    m2 = _pad2(_conv2x2_dense(params["conv2_w"], 4, 4), _L1_OUT, _L2_OUT)
    m3 = _pad2(_conv2x2_dense(params["conv3_w"], 3, 3), _L2_OUT, ow)

    # Block-diag second head layer [fc2 ; commfc2], lane-dense.
    wcomb = np.zeros((2 * 256, ow), dtype=np.float32)
    wcomb[:256, :a] = np.asarray(params["fc2_w"], np.float32)
    wcomb[256:, a:a + 1] = np.asarray(params["commfc2_w"], np.float32)
    w3_slab = np.concatenate([m3, wcomb], axis=0)               # (896, ow)

    # Merged first head layer [fc1 | commfc1].
    wcat = np.concatenate([np.asarray(params["fc1_w"], np.float32),
                           np.asarray(params["commfc1_w"], np.float32)], axis=1)

    # Factorized channel-pool matrices (0/1 entries -> exact in bf16).
    pd = np.zeros((_PD_ROWS, 32), np.float32)
    bu = np.zeros((32, _PD_ROWS), np.float32)
    off = 0
    for flat_pad, flat_real, s in [(_L1_OUT, 256, _S1),
                                   (_L2_OUT, _L2_REAL, _S2),
                                   (_L3_OUT, 128, _S3)]:
        for j in range(flat_real):
            ch = j // s
            pd[off + j, ch] = 1.0
            bu[ch, off + j] = 1.0
        off += flat_pad

    # All (1, N) row vectors in one f32 slab (gamma/beta zero on pad columns).
    rw = max(_HID, ow)
    rows = np.zeros((8, rw), dtype=np.float32)
    for i, (bname, s, flat_real) in enumerate(
            [("bn1", _S1, 256), ("bn2", _S2, _L2_REAL), ("bn3", _S3, 128)]):
        rows[2 * i, :flat_real] = np.repeat(
            np.asarray(params[f"{bname}_g"], np.float32), s)
        rows[2 * i + 1, :flat_real] = np.repeat(
            np.asarray(params[f"{bname}_b"], np.float32), s)
    rows[6, :_HID] = np.concatenate(
        [np.asarray(params["fc1_b"], np.float32).reshape(-1),
         np.asarray(params["commfc1_b"], np.float32).reshape(-1)])
    rows[7, :a] = np.asarray(params["fc2_b"], np.float32).reshape(-1)
    rows[7, a] = float(np.asarray(params["commfc2_b"]).reshape(-1)[0])

    return {
        "w1": jnp.asarray(m1, dtype=jnp.bfloat16),
        "w2": jnp.asarray(m2, dtype=jnp.bfloat16),
        "w3": jnp.asarray(w3_slab, dtype=jnp.bfloat16),
        "wcat": jnp.asarray(wcat, dtype=jnp.bfloat16),
        "pd": jnp.asarray(pd, dtype=jnp.bfloat16),
        "bu": jnp.asarray(bu, dtype=jnp.bfloat16),
        "rows": jnp.asarray(rows, dtype=jnp.float32),
        "action_size": a,
        "out_width": ow,
        "in_flat": in_flat,
        "in_flat_pad": in_flat_pad,
    }


# ----------------------------------------------------------------------------
# Forward: one pallas_call; host-side glue is only flatten / zero-pad / slice.
# ----------------------------------------------------------------------------
def actor_forward(fused, state_nchw, communication_size):
    b = state_nchw.shape[0]
    a = fused["action_size"]
    ow = fused["out_width"]
    bp = ((b + 7) // 8) * 8

    x = state_nchw.reshape(b, -1).astype(jnp.float32)
    x = jnp.pad(x, ((0, bp - b), (0, fused["in_flat_pad"] - fused["in_flat"])))

    sc = jnp.array([[communication_size, 1.0 / b, float(b), 0.0]],
                   dtype=jnp.float32)

    out = pl.pallas_call(
        functools.partial(actor_fused_kernel, a),
        out_shape=jax.ShapeDtypeStruct((bp, ow), jnp.float32),
        in_specs=[_vmem_spec()] * 8 + [_smem_spec()],
        out_specs=_vmem_spec(),
    )(x, fused["w1"], fused["w2"], fused["w3"], fused["wcat"],
      fused["pd"], fused["bu"], fused["rows"], sc)
    return out[:b, :a], out[:b, a:a + 1]


# ----------------------------------------------------------------------------
# Parameter init (torch-convention shapes) and pure-JAX f32 reference.
# ----------------------------------------------------------------------------
def init_params(key, state_size, action_size):
    c_in = state_size[0]
    ks = jax.random.split(key, 20)

    def rnd(k, shape, scale=0.1):
        return (scale * jax.random.normal(k, shape)).astype(jnp.float32)

    return {
        "conv1_w": rnd(ks[0], (16, c_in, 2, 2)), "conv1_b": rnd(ks[1], (16,)),
        "bn1_g": 1.0 + rnd(ks[2], (16,), 0.05), "bn1_b": rnd(ks[3], (16,), 0.05),
        "conv2_w": rnd(ks[4], (32, 16, 2, 2)), "conv2_b": rnd(ks[5], (32,)),
        "bn2_g": 1.0 + rnd(ks[6], (32,), 0.05), "bn2_b": rnd(ks[7], (32,), 0.05),
        "conv3_w": rnd(ks[8], (32, 32, 2, 2)), "conv3_b": rnd(ks[9], (32,)),
        "bn3_g": 1.0 + rnd(ks[10], (32,), 0.05), "bn3_b": rnd(ks[11], (32,), 0.05),
        "fc1_w": rnd(ks[12], (128, 256)), "fc1_b": rnd(ks[13], (256,)),
        "fc2_w": rnd(ks[14], (256, action_size)), "fc2_b": rnd(ks[15], (action_size,)),
        "commfc1_w": rnd(ks[16], (128, 256)), "commfc1_b": rnd(ks[17], (256,)),
        "commfc2_w": rnd(ks[18], (256, 1)), "commfc2_b": rnd(ks[19], (1,)),
    }


def actor_forward_ref(params, state_nchw, communication_size):
    def conv_bn_relu(x, w, b, g, beta):
        y = jax.lax.conv_general_dilated(
            x, w, window_strides=(1, 1), padding="VALID",
            dimension_numbers=("NCHW", "OIHW", "NCHW"))
        y = y + b.reshape(1, -1, 1, 1)
        mean = jnp.mean(y, axis=(0, 2, 3), keepdims=True)
        var = jnp.mean((y - mean) ** 2, axis=(0, 2, 3), keepdims=True)
        y = (y - mean) * jax.lax.rsqrt(var + BN_EPS)
        y = y * g.reshape(1, -1, 1, 1) + beta.reshape(1, -1, 1, 1)
        return jnp.maximum(y, 0.0)

    x = conv_bn_relu(state_nchw, params["conv1_w"], params["conv1_b"],
                     params["bn1_g"], params["bn1_b"])
    x = conv_bn_relu(x, params["conv2_w"], params["conv2_b"],
                     params["bn2_g"], params["bn2_b"])
    x = conv_bn_relu(x, params["conv3_w"], params["conv3_b"],
                     params["bn3_g"], params["bn3_b"])
    flat = x.reshape(x.shape[0], -1)

    h = jnp.maximum(flat @ params["fc1_w"] + params["fc1_b"], 0.0)
    act = jax.nn.softmax(h @ params["fc2_w"] + params["fc2_b"], axis=-1)

    hc = jnp.maximum(flat @ params["commfc1_w"] + params["commfc1_b"], 0.0)
    c = jnp.maximum(hc @ params["commfc2_w"] + params["commfc2_b"], 0.0)
    comm = communication_size * jax.nn.sigmoid(c)
    return act, comm


if __name__ == "__main__":
    state_size = (4, 5, 5)      # (C, H, W); 5x5 spatial -> 32*2*2 = 128 for fc1
    action_size = 8
    communication_size = 3.0
    batch = 2

    key = jax.random.PRNGKey(0)
    k_param, k_x = jax.random.split(key)
    params = init_params(k_param, state_size, action_size)
    fused = prepare_fused_params(params, state_size, action_size)
    state = jax.random.normal(k_x, (batch,) + state_size, dtype=jnp.float32)

    act, comm = jax.block_until_ready(
        actor_forward(fused, state, communication_size))
    act_ref, comm_ref = actor_forward_ref(params, state, communication_size)

    assert act.shape == (batch, action_size) and comm.shape == (batch, 1)
    # bf16 weights/activations in the kernel vs f32 reference -> looser tolerance.
    np.testing.assert_allclose(np.asarray(act), np.asarray(act_ref),
                               atol=2e-2, rtol=2e-2)
    np.testing.assert_allclose(np.asarray(comm), np.asarray(comm_ref),
                               atol=5e-2, rtol=5e-2)
    np.testing.assert_allclose(np.asarray(act).sum(axis=-1), np.ones(batch),
                               atol=2e-3)

    print("KERNEL_OK")
</pallas_src>

<mosaic_0001>
module attributes {stable_mosaic.version = 11 : i64} {
  func.func @actor_fused_kernel(%arg0: memref<8x128xf32, #tpu.memory_space<vmem>>, %arg1: memref<128x256xbf16, #tpu.memory_space<vmem>>, %arg2: memref<256x384xbf16, #tpu.memory_space<vmem>>, %arg3: memref<896x128xbf16, #tpu.memory_space<vmem>>, %arg4: memref<128x512xbf16, #tpu.memory_space<vmem>>, %arg5: memref<768x32xbf16, #tpu.memory_space<vmem>>, %arg6: memref<32x768xbf16, #tpu.memory_space<vmem>>, %arg7: memref<8x512xf32, #tpu.memory_space<vmem>>, %arg8: memref<1x4xf32, #tpu.memory_space<smem>>, %arg9: memref<8x128xf32, #tpu.memory_space<vmem>>) attributes {dimension_semantics = [], scalar_prefetch = 0 : i64, scratch_operands = 0 : i64, tpu.core_type = #tpu.core_type<tc>} {
    %c0 = arith.constant 0 : index
    %c0_0 = arith.constant 0 : index
    %0 = memref.load %arg8[%c0, %c0_0] : memref<1x4xf32, #tpu.memory_space<smem>>
    %c0_1 = arith.constant 0 : index
    %c1 = arith.constant 1 : index
    %1 = memref.load %arg8[%c0_1, %c1] : memref<1x4xf32, #tpu.memory_space<smem>>
    %c0_2 = arith.constant 0 : index
    %c2 = arith.constant 2 : index
    %2 = memref.load %arg8[%c0_2, %c2] : memref<1x4xf32, #tpu.memory_space<smem>>
    %3 = tpu.iota {dimensions = array<i32: 0>} : vector<8x1xi32>
    %4 = arith.sitofp %3 : vector<8x1xi32> to vector<8x1xf32>
    %5 = vector.broadcast %2 : f32 to vector<8x1xf32>
    %6 = arith.cmpf olt, %4, %5 : vector<8x1xf32>
    %c0_3 = arith.constant 0 : index
    %c0_4 = arith.constant 0 : index
    %7 = vector.load %arg0[%c0_3, %c0_4] : memref<8x128xf32, #tpu.memory_space<vmem>>, vector<8x128xf32>
    %c0_5 = arith.constant 0 : index
    %c0_6 = arith.constant 0 : index
    %8 = vector.load %arg1[%c0_5, %c0_6] : memref<128x256xbf16, #tpu.memory_space<vmem>>, vector<128x256xbf16>
    %c0_7 = arith.constant 0 : index
    %c0_8 = arith.constant 0 : index
    %9 = vector.load %arg5[%c0_7, %c0_8] : memref<768x32xbf16, #tpu.memory_space<vmem>>, vector<256x32xbf16>
    %c0_9 = arith.constant 0 : index
    %c0_10 = arith.constant 0 : index
    %10 = vector.load %arg6[%c0_9, %c0_10] : memref<32x768xbf16, #tpu.memory_space<vmem>>, vector<32x256xbf16>
    %c0_11 = arith.constant 0 : index
    %c0_12 = arith.constant 0 : index
    %11 = vector.load %arg7[%c0_11, %c0_12] : memref<8x512xf32, #tpu.memory_space<vmem>>, vector<1x256xf32>
    %c1_13 = arith.constant 1 : index
    %c0_14 = arith.constant 0 : index
    %12 = vector.load %arg7[%c1_13, %c0_14] : memref<8x512xf32, #tpu.memory_space<vmem>>, vector<1x256xf32>
    %13 = arith.truncf %7 : vector<8x128xf32> to vector<8x128xbf16>
    %cst = arith.constant dense<0.000000e+00> : vector<8x256xf32>
    %14 = tpu.matmul %13, %8, %cst {dimension_numbers = #tpu.dot_dimension_numbers<[1], [0], [0], [1], [0, 0, 1, 1], [], []>} : vector<8x128xbf16>, vector<128x256xbf16>, vector<8x256xf32> -> vector<8x256xf32>
    %cst_15 = arith.constant dense<0.000000e+00> : vector<256xf32>
    %15 = vector.multi_reduction <add>, %14, %cst_15 [0] : vector<8x256xf32> to vector<256xf32>
    %16 = vector.shape_cast %15 : vector<256xf32> to vector<1x256xf32>
    %17 = arith.mulf %14, %14 : vector<8x256xf32>
    %cst_16 = arith.constant dense<0.000000e+00> : vector<256xf32>
    %18 = vector.multi_reduction <add>, %17, %cst_16 [0] : vector<8x256xf32> to vector<256xf32>
    %19 = vector.shape_cast %18 : vector<256xf32> to vector<1x256xf32>
    %20 = tpu.concatenate %16, %19 in 0 : vector<1x256xf32>, vector<1x256xf32> -> vector<2x256xf32>
    %21 = arith.extf %9 : vector<256x32xbf16> to vector<256x32xf32>
    %cst_17 = arith.constant dense<0.000000e+00> : vector<2x32xf32>
    %22 = tpu.matmul %20, %21, %cst_17 {dimension_numbers = #tpu.dot_dimension_numbers<[1], [0], [0], [1], [0, 0, 1, 1], [], []>} : vector<2x256xf32>, vector<256x32xf32>, vector<2x32xf32> -> vector<2x32xf32>
    %cst_18 = arith.constant 6.250000e-02 : f32
    %23 = arith.mulf %1, %cst_18 : f32
    %24 = vector.broadcast %23 : f32 to vector<2x32xf32>
    %25 = arith.mulf %22, %24 : vector<2x32xf32>
    %26 = arith.extf %10 : vector<32x256xbf16> to vector<32x256xf32>
    %cst_19 = arith.constant dense<0.000000e+00> : vector<2x256xf32>
    %27 = tpu.matmul %25, %26, %cst_19 {dimension_numbers = #tpu.dot_dimension_numbers<[1], [0], [0], [1], [0, 0, 1, 1], [], []>} : vector<2x32xf32>, vector<32x256xf32>, vector<2x256xf32> -> vector<2x256xf32>
    %28 = vector.extract_strided_slice %27 {offsets = [0, 0], sizes = [1, 256], strides = [1, 1]} : vector<2x256xf32> to vector<1x256xf32>
    %29 = vector.extract_strided_slice %27 {offsets = [1, 0], sizes = [1, 256], strides = [1, 1]} : vector<2x256xf32> to vector<1x256xf32>
    %30 = arith.mulf %28, %28 : vector<1x256xf32>
    %31 = arith.subf %29, %30 : vector<1x256xf32>
    %cst_20 = arith.constant 0.000000e+00 : f32
    %32 = vector.broadcast %cst_20 : f32 to vector<1x256xf32>
    %33 = arith.maximumf %31, %32 : vector<1x256xf32>
    %34 = vector.broadcast %28 : vector<1x256xf32> to vector<8x256xf32>
    %35 = arith.subf %14, %34 : vector<8x256xf32>
    %cst_21 = arith.constant 9.99999974E-6 : f32
    %36 = vector.broadcast %cst_21 : f32 to vector<1x256xf32>
    %37 = arith.addf %33, %36 : vector<1x256xf32>
    %38 = math.rsqrt %37 : vector<1x256xf32>
    %39 = vector.broadcast %38 : vector<1x256xf32> to vector<8x256xf32>
    %40 = arith.mulf %35, %39 : vector<8x256xf32>
    %41 = vector.broadcast %11 : vector<1x256xf32> to vector<8x256xf32>
    %42 = arith.mulf %40, %41 : vector<8x256xf32>
    %43 = vector.broadcast %12 : vector<1x256xf32> to vector<8x256xf32>
    %44 = arith.addf %42, %43 : vector<8x256xf32>
    %cst_22 = arith.constant 0.000000e+00 : f32
    %45 = vector.broadcast %cst_22 : f32 to vector<8x256xf32>
    %46 = arith.maximumf %44, %45 : vector<8x256xf32>
    %cst_23 = arith.constant 0.000000e+00 : f32
    %47 = vector.shape_cast %6 : vector<8x1xi1> to vector<8x1xi1>
    %48 = vector.broadcast %47 : vector<8x1xi1> to vector<8x256xi1>
    %49 = vector.broadcast %cst_23 : f32 to vector<8x256xf32>
    %50 = arith.select %48, %46, %49 : vector<8x256xi1>, vector<8x256xf32>
    %c0_24 = arith.constant 0 : index
    %c0_25 = arith.constant 0 : index
    %51 = vector.load %arg2[%c0_24, %c0_25] : memref<256x384xbf16, #tpu.memory_space<vmem>>, vector<256x384xbf16>
    %c256 = arith.constant 256 : index
    %c0_26 = arith.constant 0 : index
    %52 = vector.load %arg5[%c256, %c0_26] : memref<768x32xbf16, #tpu.memory_space<vmem>>, vector<384x32xbf16>
    %c0_27 = arith.constant 0 : index
    %c256_28 = arith.constant 256 : index
    %53 = vector.load %arg6[%c0_27, %c256_28] : memref<32x768xbf16, #tpu.memory_space<vmem>>, vector<32x384xbf16>
    %c2_29 = arith.constant 2 : index
    %c0_30 = arith.constant 0 : index
    %54 = vector.load %arg7[%c2_29, %c0_30] : memref<8x512xf32, #tpu.memory_space<vmem>>, vector<1x384xf32>
    %c3 = arith.constant 3 : index
    %c0_31 = arith.constant 0 : index
    %55 = vector.load %arg7[%c3, %c0_31] : memref<8x512xf32, #tpu.memory_space<vmem>>, vector<1x384xf32>
    %56 = arith.truncf %50 : vector<8x256xf32> to vector<8x256xbf16>
    %cst_32 = arith.constant dense<0.000000e+00> : vector<8x384xf32>
    %57 = tpu.matmul %56, %51, %cst_32 {dimension_numbers = #tpu.dot_dimension_numbers<[1], [0], [0], [1], [0, 0, 1, 1], [], []>} : vector<8x256xbf16>, vector<256x384xbf16>, vector<8x384xf32> -> vector<8x384xf32>
    %cst_33 = arith.constant dense<0.000000e+00> : vector<384xf32>
    %58 = vector.multi_reduction <add>, %57, %cst_33 [0] : vector<8x384xf32> to vector<384xf32>
    %59 = vector.shape_cast %58 : vector<384xf32> to vector<1x384xf32>
    %60 = arith.mulf %57, %57 : vector<8x384xf32>
    %cst_34 = arith.constant dense<0.000000e+00> : vector<384xf32>
    %61 = vector.multi_reduction <add>, %60, %cst_34 [0] : vector<8x384xf32> to vector<384xf32>
    %62 = vector.shape_cast %61 : vector<384xf32> to vector<1x384xf32>
    %63 = tpu.concatenate %59, %62 in 0 : vector<1x384xf32>, vector<1x384xf32> -> vector<2x384xf32>
    %64 = arith.extf %52 : vector<384x32xbf16> to vector<384x32xf32>
    %cst_35 = arith.constant dense<0.000000e+00> : vector<2x32xf32>
    %65 = tpu.matmul %63, %64, %cst_35 {dimension_numbers = #tpu.dot_dimension_numbers<[1], [0], [0], [1], [0, 0, 1, 1], [], []>} : vector<2x384xf32>, vector<384x32xf32>, vector<2x32xf32> -> vector<2x32xf32>
    %cst_36 = arith.constant 0.111111112 : f32
    %66 = arith.mulf %1, %cst_36 : f32
    %67 = vector.broadcast %66 : f32 to vector<2x32xf32>
    %68 = arith.mulf %65, %67 : vector<2x32xf32>
    %69 = arith.extf %53 : vector<32x384xbf16> to vector<32x384xf32>
    %cst_37 = arith.constant dense<0.000000e+00> : vector<2x384xf32>
    %70 = tpu.matmul %68, %69, %cst_37 {dimension_numbers = #tpu.dot_dimension_numbers<[1], [0], [0], [1], [0, 0, 1, 1], [], []>} : vector<2x32xf32>, vector<32x384xf32>, vector<2x384xf32> -> vector<2x384xf32>
    %71 = vector.extract_strided_slice %70 {offsets = [0, 0], sizes = [1, 384], strides = [1, 1]} : vector<2x384xf32> to vector<1x384xf32>
    %72 = vector.extract_strided_slice %70 {offsets = [1, 0], sizes = [1, 384], strides = [1, 1]} : vector<2x384xf32> to vector<1x384xf32>
    %73 = arith.mulf %71, %71 : vector<1x384xf32>
    %74 = arith.subf %72, %73 : vector<1x384xf32>
    %cst_38 = arith.constant 0.000000e+00 : f32
    %75 = vector.broadcast %cst_38 : f32 to vector<1x384xf32>
    %76 = arith.maximumf %74, %75 : vector<1x384xf32>
    %77 = vector.broadcast %71 : vector<1x384xf32> to vector<8x384xf32>
    %78 = arith.subf %57, %77 : vector<8x384xf32>
    %cst_39 = arith.constant 9.99999974E-6 : f32
    %79 = vector.broadcast %cst_39 : f32 to vector<1x384xf32>
    %80 = arith.addf %76, %79 : vector<1x384xf32>
    %81 = math.rsqrt %80 : vector<1x384xf32>
    %82 = vector.broadcast %81 : vector<1x384xf32> to vector<8x384xf32>
    %83 = arith.mulf %78, %82 : vector<8x384xf32>
    %84 = vector.broadcast %54 : vector<1x384xf32> to vector<8x384xf32>
    %85 = arith.mulf %83, %84 : vector<8x384xf32>
    %86 = vector.broadcast %55 : vector<1x384xf32> to vector<8x384xf32>
    %87 = arith.addf %85, %86 : vector<8x384xf32>
    %cst_40 = arith.constant 0.000000e+00 : f32
    %88 = vector.broadcast %cst_40 : f32 to vector<8x384xf32>
    %89 = arith.maximumf %87, %88 : vector<8x384xf32>
    %cst_41 = arith.constant 0.000000e+00 : f32
    %90 = vector.shape_cast %6 : vector<8x1xi1> to vector<8x1xi1>
    %91 = vector.broadcast %90 : vector<8x1xi1> to vector<8x384xi1>
    %92 = vector.broadcast %cst_41 : f32 to vector<8x384xf32>
    %93 = arith.select %91, %89, %92 : vector<8x384xi1>, vector<8x384xf32>
    %c0_42 = arith.constant 0 : index
    %c0_43 = arith.constant 0 : index
    %94 = vector.load %arg3[%c0_42, %c0_43] : memref<896x128xbf16, #tpu.memory_space<vmem>>, vector<384x128xbf16>
    %c640 = arith.constant 640 : index
    %c0_44 = arith.constant 0 : index
    %95 = vector.load %arg5[%c640, %c0_44] : memref<768x32xbf16, #tpu.memory_space<vmem>>, vector<128x32xbf16>
    %c0_45 = arith.constant 0 : index
    %c640_46 = arith.constant 640 : index
    %96 = vector.load %arg6[%c0_45, %c640_46] : memref<32x768xbf16, #tpu.memory_space<vmem>>, vector<32x128xbf16>
    %c4 = arith.constant 4 : index
    %c0_47 = arith.constant 0 : index
    %97 = vector.load %arg7[%c4, %c0_47] : memref<8x512xf32, #tpu.memory_space<vmem>>, vector<1x128xf32>
    %c5 = arith.constant 5 : index
    %c0_48 = arith.constant 0 : index
    %98 = vector.load %arg7[%c5, %c0_48] : memref<8x512xf32, #tpu.memory_space<vmem>>, vector<1x128xf32>
    %99 = arith.truncf %93 : vector<8x384xf32> to vector<8x384xbf16>
    %cst_49 = arith.constant dense<0.000000e+00> : vector<8x128xf32>
    %100 = tpu.matmul %99, %94, %cst_49 {dimension_numbers = #tpu.dot_dimension_numbers<[1], [0], [0], [1], [0, 0, 1, 1], [], []>} : vector<8x384xbf16>, vector<384x128xbf16>, vector<8x128xf32> -> vector<8x128xf32>
    %cst_50 = arith.constant dense<0.000000e+00> : vector<128xf32>
    %101 = vector.multi_reduction <add>, %100, %cst_50 [0] : vector<8x128xf32> to vector<128xf32>
    %102 = vector.shape_cast %101 : vector<128xf32> to vector<1x128xf32>
    %103 = arith.mulf %100, %100 : vector<8x128xf32>
    %cst_51 = arith.constant dense<0.000000e+00> : vector<128xf32>
    %104 = vector.multi_reduction <add>, %103, %cst_51 [0] : vector<8x128xf32> to vector<128xf32>
    %105 = vector.shape_cast %104 : vector<128xf32> to vector<1x128xf32>
    %106 = tpu.concatenate %102, %105 in 0 : vector<1x128xf32>, vector<1x128xf32> -> vector<2x128xf32>
    %107 = arith.extf %95 : vector<128x32xbf16> to vector<128x32xf32>
    %cst_52 = arith.constant dense<0.000000e+00> : vector<2x32xf32>
    %108 = tpu.matmul %106, %107, %cst_52 {dimension_numbers = #tpu.dot_dimension_numbers<[1], [0], [0], [1], [0, 0, 1, 1], [], []>} : vector<2x128xf32>, vector<128x32xf32>, vector<2x32xf32> -> vector<2x32xf32>
    %cst_53 = arith.constant 2.500000e-01 : f32
    %109 = arith.mulf %1, %cst_53 : f32
    %110 = vector.broadcast %109 : f32 to vector<2x32xf32>
    %111 = arith.mulf %108, %110 : vector<2x32xf32>
    %112 = arith.extf %96 : vector<32x128xbf16> to vector<32x128xf32>
    %cst_54 = arith.constant dense<0.000000e+00> : vector<2x128xf32>
    %113 = tpu.matmul %111, %112, %cst_54 {dimension_numbers = #tpu.dot_dimension_numbers<[1], [0], [0], [1], [0, 0, 1, 1], [], []>} : vector<2x32xf32>, vector<32x128xf32>, vector<2x128xf32> -> vector<2x128xf32>
    %114 = vector.extract_strided_slice %113 {offsets = [0, 0], sizes = [1, 128], strides = [1, 1]} : vector<2x128xf32> to vector<1x128xf32>
    %115 = vector.extract_strided_slice %113 {offsets = [1, 0], sizes = [1, 128], strides = [1, 1]} : vector<2x128xf32> to vector<1x128xf32>
    %116 = arith.mulf %114, %114 : vector<1x128xf32>
    %117 = arith.subf %115, %116 : vector<1x128xf32>
    %cst_55 = arith.constant 0.000000e+00 : f32
    %118 = vector.broadcast %cst_55 : f32 to vector<1x128xf32>
    %119 = arith.maximumf %117, %118 : vector<1x128xf32>
    %120 = vector.broadcast %114 : vector<1x128xf32> to vector<8x128xf32>
    %121 = arith.subf %100, %120 : vector<8x128xf32>
    %cst_56 = arith.constant 9.99999974E-6 : f32
    %122 = vector.broadcast %cst_56 : f32 to vector<1x128xf32>
    %123 = arith.addf %119, %122 : vector<1x128xf32>
    %124 = math.rsqrt %123 : vector<1x128xf32>
    %125 = vector.broadcast %124 : vector<1x128xf32> to vector<8x128xf32>
    %126 = arith.mulf %121, %125 : vector<8x128xf32>
    %127 = vector.broadcast %97 : vector<1x128xf32> to vector<8x128xf32>
    %128 = arith.mulf %126, %127 : vector<8x128xf32>
    %129 = vector.broadcast %98 : vector<1x128xf32> to vector<8x128xf32>
    %130 = arith.addf %128, %129 : vector<8x128xf32>
    %cst_57 = arith.constant 0.000000e+00 : f32
    %131 = vector.broadcast %cst_57 : f32 to vector<8x128xf32>
    %132 = arith.maximumf %130, %131 : vector<8x128xf32>
    %cst_58 = arith.constant 0.000000e+00 : f32
    %133 = vector.shape_cast %6 : vector<8x1xi1> to vector<8x1xi1>
    %134 = vector.broadcast %133 : vector<8x1xi1> to vector<8x128xi1>
    %135 = vector.broadcast %cst_58 : f32 to vector<8x128xf32>
    %136 = arith.select %134, %132, %135 : vector<8x128xi1>, vector<8x128xf32>
    %137 = arith.truncf %136 : vector<8x128xf32> to vector<8x128xbf16>
    %c0_59 = arith.constant 0 : index
    %c0_60 = arith.constant 0 : index
    %138 = vector.load %arg4[%c0_59, %c0_60] : memref<128x512xbf16, #tpu.memory_space<vmem>>, vector<128x512xbf16>
    %cst_61 = arith.constant dense<0.000000e+00> : vector<8x512xf32>
    %139 = tpu.matmul %137, %138, %cst_61 {dimension_numbers = #tpu.dot_dimension_numbers<[1], [0], [0], [1], [0, 0, 1, 1], [], []>} : vector<8x128xbf16>, vector<128x512xbf16>, vector<8x512xf32> -> vector<8x512xf32>
    %c6 = arith.constant 6 : index
    %c0_62 = arith.constant 0 : index
    %140 = vector.load %arg7[%c6, %c0_62] : memref<8x512xf32, #tpu.memory_space<vmem>>, vector<1x512xf32>
    %141 = vector.broadcast %140 : vector<1x512xf32> to vector<8x512xf32>
    %142 = arith.addf %139, %141 : vector<8x512xf32>
    %cst_63 = arith.constant 0.000000e+00 : f32
    %143 = vector.broadcast %cst_63 : f32 to vector<8x512xf32>
    %144 = arith.maximumf %142, %143 : vector<8x512xf32>
    %145 = arith.truncf %144 : vector<8x512xf32> to vector<8x512xbf16>
    %c384 = arith.constant 384 : index
    %c0_64 = arith.constant 0 : index
    %146 = vector.load %arg3[%c384, %c0_64] : memref<896x128xbf16, #tpu.memory_space<vmem>>, vector<512x128xbf16>
    %cst_65 = arith.constant dense<0.000000e+00> : vector<8x128xf32>
    %147 = tpu.matmul %145, %146, %cst_65 {dimension_numbers = #tpu.dot_dimension_numbers<[1], [0], [0], [1], [0, 0, 1, 1], [], []>} : vector<8x512xbf16>, vector<512x128xbf16>, vector<8x128xf32> -> vector<8x128xf32>
    %c7 = arith.constant 7 : index
    %c0_66 = arith.constant 0 : index
    %148 = vector.load %arg7[%c7, %c0_66] : memref<8x512xf32, #tpu.memory_space<vmem>>, vector<1x128xf32>
    %149 = vector.broadcast %148 : vector<1x128xf32> to vector<8x128xf32>
    %150 = arith.addf %147, %149 : vector<8x128xf32>
    %151 = tpu.iota {dimensions = array<i32: 1>} : vector<8x128xi32>
    %c8_i32 = arith.constant 8 : i32
    %152 = vector.broadcast %c8_i32 : i32 to vector<8x128xi32>
    %153 = arith.cmpi slt, %151, %152 : vector<8x128xi32>
    %cst_67 = arith.constant 0xFF800000 : f32
    %154 = vector.broadcast %cst_67 : f32 to vector<8x128xf32>
    %155 = arith.select %153, %150, %154 : vector<8x128xi1>, vector<8x128xf32>
    %cst_68 = arith.constant dense<0xFF800000> : vector<8xf32>
    %156 = vector.multi_reduction <maximumf>, %155, %cst_68 [1] : vector<8x128xf32> to vector<8xf32>
    %157 = vector.shape_cast %156 : vector<8xf32> to vector<8x1xf32>
    %158 = vector.broadcast %157 : vector<8x1xf32> to vector<8x128xf32>
    %159 = arith.subf %150, %158 : vector<8x128xf32>
    %160 = math.exp %159 : vector<8x128xf32>
    %cst_69 = arith.constant 0.000000e+00 : f32
    %161 = vector.broadcast %cst_69 : f32 to vector<8x128xf32>
    %162 = arith.select %153, %160, %161 : vector<8x128xi1>, vector<8x128xf32>
    %cst_70 = arith.constant dense<0.000000e+00> : vector<8xf32>
    %163 = vector.multi_reduction <add>, %162, %cst_70 [1] : vector<8x128xf32> to vector<8xf32>
    %164 = vector.shape_cast %163 : vector<8xf32> to vector<8x1xf32>
    %cst_71 = arith.constant 1.000000e+00 : f32
    %165 = vector.broadcast %cst_71 : f32 to vector<8x1xf32>
    %166 = arith.divf %165, %164 : vector<8x1xf32>
    %167 = vector.broadcast %166 : vector<8x1xf32> to vector<8x128xf32>
    %168 = arith.mulf %162, %167 : vector<8x128xf32>
    %cst_72 = arith.constant 0.000000e+00 : f32
    %169 = vector.broadcast %cst_72 : f32 to vector<8x128xf32>
    %170 = arith.maximumf %150, %169 : vector<8x128xf32>
    %cst_73 = arith.constant 0.000000e+00 : f32
    %171 = vector.broadcast %cst_73 : f32 to vector<8x128xf32>
    %172 = arith.subf %171, %170 : vector<8x128xf32>
    %173 = math.exp %172 : vector<8x128xf32>
    %cst_74 = arith.constant 1.000000e+00 : f32
    %174 = vector.broadcast %cst_74 : f32 to vector<8x128xf32>
    %175 = arith.addf %174, %173 : vector<8x128xf32>
    %176 = tpu.reciprocal %175 {approx = true} : vector<8x128xf32> -> vector<8x128xf32>
    %177 = vector.broadcast %0 : f32 to vector<8x128xf32>
    %178 = arith.mulf %177, %176 : vector<8x128xf32>
    %c8_i32_75 = arith.constant 8 : i32
    %179 = vector.broadcast %c8_i32_75 : i32 to vector<8x128xi32>
    %180 = arith.cmpi eq, %151, %179 : vector<8x128xi32>
    %cst_76 = arith.constant 0.000000e+00 : f32
    %181 = vector.broadcast %cst_76 : f32 to vector<8x128xf32>
    %182 = arith.select %180, %178, %181 : vector<8x128xi1>, vector<8x128xf32>
    %183 = arith.select %153, %168, %182 : vector<8x128xi1>, vector<8x128xf32>
    %c0_77 = arith.constant 0 : index
    %c0_78 = arith.constant 0 : index
    %184 = vector.load %arg9[%c0_77, %c0_78] : memref<8x128xf32, #tpu.memory_space<vmem>>, vector<8x128xf32>
    tpu.vector_store %arg9[%c0_77, %c0_78], %183 {strides = array<i32>} : memref<8x128xf32, #tpu.memory_space<vmem>>, vector<8x128xf32>,
    return
  }
}

</mosaic_0001>

<llo_original>
// kernel: tpu_custom_call.1
$region0: #{tpu_custom_call.1}
  #allocation0 [shape = 'u32[]', space=smem, size = 0x4, offset = 0x4, fixed_abs, tag = 'smem constant byte address 0x4 - core index']
  #allocation1 [shape = 'u32[144,128]{1,0:T(1,128)}', space=vmem, size = 0x12000, scoped, tag = 'internal scratch']
  %s0 = inlined_call_operand.hbm [shape: f32[8,128], index: 0, kind: input, shape index: {}]
  %s1 = inlined_call_operand.hbm [shape: bf16[128,256], index: 1, kind: input, shape index: {}]
  %s2 = inlined_call_operand.hbm [shape: bf16[256,384], index: 2, kind: input, shape index: {}]
  %s3 = inlined_call_operand.vmem [shape: bf16[896,128], index: 3, kind: input, shape index: {}]
  %s4 = inlined_call_operand.hbm [shape: bf16[128,512], index: 4, kind: input, shape index: {}]
  %s5 = inlined_call_operand.vmem [shape: bf16[768,32], index: 5, kind: input, shape index: {}]
  %s6 = inlined_call_operand.hbm [shape: bf16[32,768], index: 6, kind: input, shape index: {}]
  %s7 = inlined_call_operand.vmem [shape: f32[8,512], index: 7, kind: input, shape index: {}]
  %s8 = inlined_call_operand.vmem [shape: f32[1,4], index: 8, kind: input, shape index: {}]
  %s9 = inlined_call_operand.hbm [shape: f32[8,128], index: 9, kind: output, shape index: {}]
  %s10 = sld [smem:[#allocation0]]
  $region70: #{tpu_custom_call.1} parent=0
    _
  %s12 = ssub.s32 1, %s10
  %s13 = scalar_select 0, %s12, %s10
  $region1: #{tpu_custom_call.1} parent=0
    #allocation2 [shape = 'u8[4096]{0}', space=vmem, size = 0x1000, scoped, tag = 'input window, operand 0, single buffered']
    #allocation3 [shape = 's32[1]{0}', space=sflag, size = 0x4, scoped, tag = 'scoped memory for tpu_custom_call.1']
    #allocation4 [shape = 's32[1]{0}', space=sflag, size = 0x4, scoped, tag = 'scoped memory for tpu_custom_call.1']
    #allocation5 [shape = 's32[1]{0}', space=sflag, size = 0x4, scoped, tag = 'scoped memory for tpu_custom_call.1']
    #allocation6 [shape = 'u8[65536]{0}', space=vmem, size = 0x10000, scoped, tag = 'input window, operand 1, single buffered']
    #allocation7 [shape = 's32[1]{0}', space=sflag, size = 0x4, scoped, tag = 'scoped memory for tpu_custom_call.1']
    #allocation8 [shape = 'u8[196608]{0}', space=vmem, size = 0x30000, scoped, tag = 'input window, operand 2, single buffered']
    #allocation9 [shape = 'u8[131072]{0}', space=vmem, size = 0x20000, scoped, tag = 'input window, operand 4, single buffered']
    #allocation10 [shape = 's32[1]{0}', space=sflag, size = 0x4, scoped, tag = 'scoped memory for tpu_custom_call.1']
    #allocation11 [shape = 'u8[49152]{0}', space=vmem, size = 0xc000, scoped, tag = 'input window, operand 6, single buffered']
    #allocation12 [shape = 'u8[512]{0}', space=smem, size = 0x200, scoped, tag = 'input window, operand 8, single buffered']
    #allocation13 [shape = 'u8[4096]{0}', space=vmem, size = 0x1000, scoped, tag = 'output window, operand 0, single buffered']
    %14 = vsyncpa [#allocation3], 0
    %15 = vsyncpa [#allocation7], 0
    %16 = vsyncpa [#allocation10], 0
    %17 = vsyncpa [#allocation5], 0
    %18 = vsyncpa [#allocation4], 0
    // Predicated region
    $region2: #{tpu_custom_call.1} parent=1 // pred_check
      _
    $region3: #{tpu_custom_call.1} parent=1 // pred_check_branch
      %20 = sbr.rel (0) target = $region5
    $region4: #{tpu_custom_call.1} parent=1 // pred_region
      %s22 = ssub.s32 128, 128
      %23 = vsyncadd [#allocation3], %s22
      %s25 = sshll.u32 [#allocation2], 4
      %s26 = int_to_ptr.vmem [resolvable:$true] %s25
      %28 = dma.hbm_to_vmem [thread:$0]  %s0, 128, %s26, [#allocation3]
    $region5: #{tpu_custom_call.1} parent=1 // pred_fallthru
      _
    // Predicated region
    $region6: #{tpu_custom_call.1} parent=1 // pred_check
      _
    $region7: #{tpu_custom_call.1} parent=1 // pred_check_branch
      %30 = sbr.rel (0) target = $region9
    $region8: #{tpu_custom_call.1} parent=1 // pred_region
      %s32 = ssub.s32 2048, 2048
      %33 = vsyncadd [#allocation7], %s32
      %s34 = sshll.u32 [#allocation6], 4
      %s35 = int_to_ptr.vmem [resolvable:$true] %s34
      %40 = dma.hbm_to_vmem [thread:$0]  %s1, 2048, %s35, [#allocation7], 128, 128, 8
    $region9: #{tpu_custom_call.1} parent=1 // pred_fallthru
      _
    // Predicated region
    $region10: #{tpu_custom_call.1} parent=1 // pred_check
      _
    $region11: #{tpu_custom_call.1} parent=1 // pred_check_branch
      %42 = sbr.rel (0) target = $region13
    $region12: #{tpu_custom_call.1} parent=1 // pred_region
      %s44 = ssub.s32 6144, 6144
      %45 = vsyncadd [#allocation7], %s44
      %s46 = sshll.u32 [#allocation8], 4
      %s47 = int_to_ptr.vmem [resolvable:$true] %s46
      %52 = dma.hbm_to_vmem [thread:$0]  %s2, 6144, %s47, [#allocation7], 192, 192, 12
    $region13: #{tpu_custom_call.1} parent=1 // pred_fallthru
      _
    // Predicated region
    $region14: #{tpu_custom_call.1} parent=1 // pred_check
      _
    $region15: #{tpu_custom_call.1} parent=1 // pred_check_branch
      %54 = sbr.rel (0) target = $region17
    $region16: #{tpu_custom_call.1} parent=1 // pred_region
      _
    $region17: #{tpu_custom_call.1} parent=1 // pred_fallthru
      _
    // Predicated region
    $region18: #{tpu_custom_call.1} parent=1 // pred_check
      _
    $region19: #{tpu_custom_call.1} parent=1 // pred_check_branch
      %56 = sbr.rel (0) target = $region21
    $region20: #{tpu_custom_call.1} parent=1 // pred_region
      %s58 = ssub.s32 4096, 4096
      %59 = vsyncadd [#allocation10], %s58
      %s60 = sshll.u32 [#allocation9], 4
      %s61 = int_to_ptr.vmem [resolvable:$true] %s60
      %66 = dma.hbm_to_vmem [thread:$0]  %s4, 4096, %s61, [#allocation10], 256, 256, 16
    $region21: #{tpu_custom_call.1} parent=1 // pred_fallthru
      _
    // Predicated region
    $region22: #{tpu_custom_call.1} parent=1 // pred_check
      _
    $region23: #{tpu_custom_call.1} parent=1 // pred_check_branch
      %68 = sbr.rel (0) target = $region25
    $region24: #{tpu_custom_call.1} parent=1 // pred_region
      _
    $region25: #{tpu_custom_call.1} parent=1 // pred_fallthru
      _
    // Predicated region
    $region26: #{tpu_custom_call.1} parent=1 // pred_check
      _
    $region27: #{tpu_custom_call.1} parent=1 // pred_check_branch
      %70 = sbr.rel (0) target = $region29
    $region28: #{tpu_custom_call.1} parent=1 // pred_region
      %s72 = ssub.s32 1536, 1536
      %73 = vsyncadd [#allocation10], %s72
      %s74 = sshll.u32 [#allocation11], 4
      %s75 = int_to_ptr.vmem [resolvable:$true] %s74
      %80 = dma.hbm_to_vmem [thread:$0]  %s6, 1536, %s75, [#allocation10], 384, 384, 24
    $region29: #{tpu_custom_call.1} parent=1 // pred_fallthru
      _
    // Predicated region
    $region30: #{tpu_custom_call.1} parent=1 // pred_check
      _
    $region31: #{tpu_custom_call.1} parent=1 // pred_check_branch
      %82 = sbr.rel (0) target = $region33
    $region32: #{tpu_custom_call.1} parent=1 // pred_region
      _
    $region33: #{tpu_custom_call.1} parent=1 // pred_fallthru
      _
    // Predicated region
    $region34: #{tpu_custom_call.1} parent=1 // pred_check
      _
    $region35: #{tpu_custom_call.1} parent=1 // pred_check_branch
      %84 = sbr.rel (0) target = $region37
    $region36: #{tpu_custom_call.1} parent=1 // pred_region
      %s86 = ssub.s32 16, 16
      %87 = vsyncadd [#allocation5], %s86
      %s89 = sshll.u32 %s8, 4
      %s90 = int_to_ptr.vmem [resolvable:$true] %s89
      %92 = dma.vmem_to_smem %s90, 16, [#allocation12], [#allocation5]
    $region37: #{tpu_custom_call.1} parent=1 // pred_fallthru
      _
    // Predicated region
    $region38: #{tpu_custom_call.1} parent=1 // pred_check
      _
    $region39: #{tpu_custom_call.1} parent=1 // pred_check_branch
      %94 = sbr.rel (0) target = $region41
    $region40: #{tpu_custom_call.1} parent=1 // pred_region
      %95 = dma.done [#allocation3], 128
    $region41: #{tpu_custom_call.1} parent=1 // pred_fallthru
      _
    // Predicated region
    $region42: #{tpu_custom_call.1} parent=1 // pred_check
      _
    $region43: #{tpu_custom_call.1} parent=1 // pred_check_branch
      %97 = sbr.rel (0) target = $region45
    $region44: #{tpu_custom_call.1} parent=1 // pred_region
      %98 = dma.done [#allocation7], 2048
    $region45: #{tpu_custom_call.1} parent=1 // pred_fallthru
      _
    // Predicated region
    $region46: #{tpu_custom_call.1} parent=1 // pred_check
      _
    $region47: #{tpu_custom_call.1} parent=1 // pred_check_branch
      %100 = sbr.rel (0) target = $region49
    $region48: #{tpu_custom_call.1} parent=1 // pred_region
      %101 = dma.done [#allocation7], 6144
    $region49: #{tpu_custom_call.1} parent=1 // pred_fallthru
      _
    // Predicated region
    $region50: #{tpu_custom_call.1} parent=1 // pred_check
      _
    $region51: #{tpu_custom_call.1} parent=1 // pred_check_branch
      %103 = sbr.rel (0) target = $region53
    $region52: #{tpu_custom_call.1} parent=1 // pred_region
      %104 = dma.done [#allocation10], 4096
    $region53: #{tpu_custom_call.1} parent=1 // pred_fallthru
      _
    // Predicated region
    $region54: #{tpu_custom_call.1} parent=1 // pred_check
      _
    $region55: #{tpu_custom_call.1} parent=1 // pred_check_branch
      %106 = sbr.rel (0) target = $region57
    $region56: #{tpu_custom_call.1} parent=1 // pred_region
      %107 = dma.done [#allocation10], 1536
    $region57: #{tpu_custom_call.1} parent=1 // pred_fallthru
      _
    // Predicated region
    $region58: #{tpu_custom_call.1} parent=1 // pred_check
      _
    $region59: #{tpu_custom_call.1} parent=1 // pred_check_branch
      %109 = sbr.rel (0) target = $region61
    $region60: #{tpu_custom_call.1} parent=1 // pred_region
      %110 = dma.done [#allocation5], 16
    $region61: #{tpu_custom_call.1} parent=1 // pred_fallthru
      _
    %111 = sfence
    %s113 = sld [smem:[#allocation12]]
    %s114 = sld [smem:[#allocation12 + $0x1]]
    %s115 = sld [smem:[#allocation12 + $0x2]]
    %v116 = vlaneseq
    %v117 = vshrl.u32 %v116, 7
    %v118 = vcvt.s32.f32 %v117
    %v119 = vstv %s115
    %vm120 = vcmp.lt.f32.partialorder %v118, %v119
    %v121 = vld [vmem:[#allocation2] sm:$0xff]
    %v122 = vld [vmem:[#allocation6] sm:$0xff]
    %v123 = vld [vmem:[#allocation6 + $0x8] sm:$0xff]
    %v124 = vld [vmem:[#allocation6 + $0x10] sm:$0xff]
    %v125 = vld [vmem:[#allocation6 + $0x18] sm:$0xff]
    %v126 = vld [vmem:[#allocation6 + $0x20] sm:$0xff]
    %v127 = vld [vmem:[#allocation6 + $0x28] sm:$0xff]
    %v128 = vld [vmem:[#allocation6 + $0x30] sm:$0xff]
    %v129 = vld [vmem:[#allocation6 + $0x38] sm:$0xff]
    %v130 = vld [vmem:[#allocation6 + $0x40] sm:$0xff]
    %v131 = vld [vmem:[#allocation6 + $0x48] sm:$0xff]
    %v132 = vld [vmem:[#allocation6 + $0x50] sm:$0xff]
    %v133 = vld [vmem:[#allocation6 + $0x58] sm:$0xff]
    %v134 = vld [vmem:[#allocation6 + $0x60] sm:$0xff]
    %v135 = vld [vmem:[#allocation6 + $0x68] sm:$0xff]
    %v136 = vld [vmem:[#allocation6 + $0x70] sm:$0xff]
    %v137 = vld [vmem:[#allocation6 + $0x78] sm:$0xff]
    %v138 = vld [vmem:[%s5] sm:$0xf]
    %v139 = vld [vmem:[%s5 + $0x4] sm:$0xf]
    %v140 = vld [vmem:[%s5 + $0x8] sm:$0xf]
    %v141 = vld [vmem:[%s5 + $0xc] sm:$0xf]
    %v142 = vld [vmem:[%s5 + $0x10] sm:$0xf]
    %v143 = vld [vmem:[%s5 + $0x14] sm:$0xf]
    %v144 = vld [vmem:[%s5 + $0x18] sm:$0xf]
    %v145 = vld [vmem:[%s5 + $0x1c] sm:$0xf]
    %v146 = vld [vmem:[%s5 + $0x20] sm:$0xf]
    %v147 = vld [vmem:[%s5 + $0x24] sm:$0xf]
    %v148 = vld [vmem:[%s5 + $0x28] sm:$0xf]
    %v149 = vld [vmem:[%s5 + $0x2c] sm:$0xf]
    %v150 = vld [vmem:[%s5 + $0x30] sm:$0xf]
    %v151 = vld [vmem:[%s5 + $0x34] sm:$0xf]
    %v152 = vld [vmem:[%s5 + $0x38] sm:$0xf]
    %v153 = vld [vmem:[%s5 + $0x3c] sm:$0xf]
    %v154 = vld [vmem:[%s5 + $0x40] sm:$0xf]
    %v155 = vld [vmem:[%s5 + $0x44] sm:$0xf]
    %v156 = vld [vmem:[%s5 + $0x48] sm:$0xf]
    %v157 = vld [vmem:[%s5 + $0x4c] sm:$0xf]
    %v158 = vld [vmem:[%s5 + $0x50] sm:$0xf]
    %v159 = vld [vmem:[%s5 + $0x54] sm:$0xf]
    %v160 = vld [vmem:[%s5 + $0x58] sm:$0xf]
    %v161 = vld [vmem:[%s5 + $0x5c] sm:$0xf]
    %v162 = vld [vmem:[%s5 + $0x60] sm:$0xf]
    %v163 = vld [vmem:[%s5 + $0x64] sm:$0xf]
    %v164 = vld [vmem:[%s5 + $0x68] sm:$0xf]
    %v165 = vld [vmem:[%s5 + $0x6c] sm:$0xf]
    %v166 = vld [vmem:[%s5 + $0x70] sm:$0xf]
    %v167 = vld [vmem:[%s5 + $0x74] sm:$0xf]
    %v168 = vld [vmem:[%s5 + $0x78] sm:$0xf]
    %v169 = vld [vmem:[%s5 + $0x7c] sm:$0xf]
    %v170 = vld [vmem:[#allocation11] sm:$0xff]
    %v171 = vld [vmem:[#allocation11 + $0x18] sm:$0xff]
    %v172 = vld [vmem:[#allocation11 + $0x30] sm:$0xff]
    %v173 = vld [vmem:[#allocation11 + $0x48] sm:$0xff]
    %v174 = vld [vmem:[%s7] ss:$8 sm:$0x3]
    %s175 = scalar_lea.vmem %s7, 1
    %v176 = vld [vmem:[%s175] ss:$8 sm:$0x3]
    %v177 = vpack.c.bf16 %v121, %v121
    %v194 = vunpack.c.l.b16 %v122
    %v195 = vunpack.c.h.b16 %v122
    %v196 = vunpack.c.l.b16 %v123
    %v197 = vunpack.c.h.b16 %v123
    %v198 = vunpack.c.l.b16 %v124
    %v199 = vunpack.c.h.b16 %v124
    %v200 = vunpack.c.l.b16 %v125
    %v201 = vunpack.c.h.b16 %v125
    %v202 = vunpack.c.l.b16 %v126
    %v203 = vunpack.c.h.b16 %v126
    %v204 = vunpack.c.l.b16 %v127
    %v205 = vunpack.c.h.b16 %v127
    %v206 = vunpack.c.l.b16 %v128
    %v207 = vunpack.c.h.b16 %v128
    %v208 = vunpack.c.l.b16 %v129
    %v209 = vunpack.c.h.b16 %v129
    %v210 = vunpack.c.l.b16 %v130
    %v211 = vunpack.c.h.b16 %v130
    %v212 = vunpack.c.l.b16 %v131
    %v213 = vunpack.c.h.b16 %v131
    %v214 = vunpack.c.l.b16 %v132
    %v215 = vunpack.c.h.b16 %v132
    %v216 = vunpack.c.l.b16 %v133
    %v217 = vunpack.c.h.b16 %v133
    %v218 = vunpack.c.l.b16 %v134
    %v219 = vunpack.c.h.b16 %v134
    %v220 = vunpack.c.l.b16 %v135
    %v221 = vunpack.c.h.b16 %v135
    %v222 = vunpack.c.l.b16 %v136
    %v223 = vunpack.c.h.b16 %v136
    %v224 = vunpack.c.l.b16 %v137
    %v225 = vunpack.c.h.b16 %v137
    %v226 = vpack.c.b16 %v196, %v194
    %v227 = vpack.c.b16 %v197, %v195
    %v228 = vpack.c.b16 %v200, %v198
    %v229 = vpack.c.b16 %v201, %v199
    %v230 = vpack.c.b16 %v204, %v202
    %v231 = vpack.c.b16 %v205, %v203
    %v232 = vpack.c.b16 %v208, %v206
    %v233 = vpack.c.b16 %v209, %v207
    %v234 = vpack.c.b16 %v212, %v210
    %v235 = vpack.c.b16 %v213, %v211
    %v236 = vpack.c.b16 %v216, %v214
    %v237 = vpack.c.b16 %v217, %v215
    %v238 = vpack.c.b16 %v220, %v218
    %v239 = vpack.c.b16 %v221, %v219
    %v240 = vpack.c.b16 %v224, %v222
    %v241 = vpack.c.b16 %v225, %v223
    %258 = vmatprep.subr.bf16.mxu0 %v241
    %259 = vmatpush1.bf16.msra.mxu0 %v240
    %260 = vmatprep.subr.bf16.mxu0 %v239
    %261 = vmatpush1.bf16.msra.mxu0 %v238
    %262 = vmatprep.subr.bf16.mxu0 %v237
    %263 = vmatpush1.bf16.msra.mxu0 %v236
    %264 = vmatprep.subr.bf16.mxu0 %v235
    %265 = vmatpush1.bf16.msra.mxu0 %v234
    %266 = vmatprep.subr.bf16.mxu0 %v233
    %267 = vmatpush1.bf16.msra.mxu0 %v232
    %268 = vmatprep.subr.bf16.mxu0 %v231
    %269 = vmatpush1.bf16.msra.mxu0 %v230
    %270 = vmatprep.subr.bf16.mxu0 %v229
    %271 = vmatpush1.bf16.msra.mxu0 %v228
    %272 = vmatprep.subr.bf16.mxu0 %v227
    %273 = vmatpush1.bf16.msra.mxu0 %v226
    %274 = vmatprep.subr.bf16.mxu0 0
    %275 = vmatpush2.bf16.msra.mxu0 0
    %276 = vmatprep.subr.bf16.mxu0 0
    %277 = vmatpush2.bf16.msra.mxu0 0
    %278 = vmatprep.subr.bf16.mxu0 0
    %279 = vmatpush2.bf16.msra.mxu0 0
    %280 = vmatprep.subr.bf16.mxu0 0
    %281 = vmatpush2.bf16.msra.mxu0 0
    %282 = vmatprep.subr.bf16.mxu0 0
    %283 = vmatpush2.bf16.msra.mxu0 0
    %284 = vmatprep.subr.bf16.mxu0 0
    %285 = vmatpush2.bf16.msra.mxu0 0
    %286 = vmatprep.subr.bf16.mxu0 0
    %287 = vmatpush2.bf16.msra.mxu0 0
    %288 = vmatprep.subr.bf16.mxu0 0
    %289 = vmatpush2.bf16.msra.mxu0 0
    %290 = vmatprep.mubr.bf16.mxu0 0
    %291 = vmatmul.mubr.bf16.gmra.mxu0 %v177
    %v292 = vpop.f32.mrf.mxu0
    %v293 = vadd.f32 0.0, %v292
    %v294 = vpop.f32.mrf.mxu0
    %v295 = vadd.f32 0.0, %v294
    %v296 = vpop.f32.mrf.mxu0
    %v297 = vpop.f32.mrf.mxu0
    %298 = vdwg.mxu0
    %v299 = vrot.slane %v293, 4
    %v300 = vadd.f32 %v293, %v299
    %v301 = vrot.slane %v300, 2
    %v302 = vadd.f32 %v300, %v301
    %v303 = vrot.slane %v302, 1
    %v304 = vadd.f32 %v302, %v303
    %v305 = vrot.slane %v295, 4
    %v306 = vadd.f32 %v295, %v305
    %v307 = vrot.slane %v306, 2
    %v308 = vadd.f32 %v306, %v307
    %v309 = vrot.slane %v308, 1
    %v310 = vadd.f32 %v308, %v309
    %v311 = vmul.f32 %v293, %v293
    %v312 = vmul.f32 %v295, %v295
    %v313 = vrot.slane %v311, 4
    %v314 = vadd.f32 %v311, %v313
    %v315 = vrot.slane %v314, 2
    %v316 = vadd.f32 %v314, %v315
    %v317 = vrot.slane %v316, 1
    %v318 = vadd.f32 %v316, %v317
    %v319 = vrot.slane %v312, 4
    %v320 = vadd.f32 %v312, %v319
    %v321 = vrot.slane %v320, 2
    %v322 = vadd.f32 %v320, %v321
    %v323 = vrot.slane %v322, 1
    %v324 = vadd.f32 %v322, %v323
    %vm325 = vcmask 1040384
    %v326 = vsel %vm325, %v304, %v318
    %v327 = vsel %vm325, %v310, %v324
    %v328 = vunpack.c.l.bf16 %v138
    %v329 = vunpack.c.l.bf16 %v139
    %v330 = vunpack.c.l.bf16 %v140
    %v331 = vunpack.c.l.bf16 %v141
    %v332 = vunpack.c.l.bf16 %v142
    %v333 = vunpack.c.l.bf16 %v143
    %v334 = vunpack.c.l.bf16 %v144
    %v335 = vunpack.c.l.bf16 %v145
    %v336 = vunpack.c.l.bf16 %v146
    %v337 = vunpack.c.l.bf16 %v147
    %v338 = vunpack.c.l.bf16 %v148
    %v339 = vunpack.c.l.bf16 %v149
    %v340 = vunpack.c.l.bf16 %v150
    %v341 = vunpack.c.l.bf16 %v151
    %v342 = vunpack.c.l.bf16 %v152
    %v343 = vunpack.c.l.bf16 %v153
    %v344 = vunpack.c.l.bf16 %v154
    %v345 = vunpack.c.l.bf16 %v155
    %v346 = vunpack.c.l.bf16 %v156
    %v347 = vunpack.c.l.bf16 %v157
    %v348 = vunpack.c.l.bf16 %v158
    %v349 = vunpack.c.l.bf16 %v159
    %v350 = vunpack.c.l.bf16 %v160
    %v351 = vunpack.c.l.bf16 %v161
    %v352 = vunpack.c.l.bf16 %v162
    %v353 = vunpack.c.l.bf16 %v163
    %v354 = vunpack.c.l.bf16 %v164
    %v355 = vunpack.c.l.bf16 %v165
    %v356 = vunpack.c.l.bf16 %v166
    %v357 = vunpack.c.l.bf16 %v167
    %v358 = vunpack.c.l.bf16 %v168
    %v359 = vunpack.c.l.bf16 %v169
    %360 = vmatprep.subr.mxu0 0.0
    %361 = vmatpush1.msra.mxu0 %v343
    %362 = vmatprep.subr.mxu0 0.0
    %363 = vmatpush1.msra.mxu0 %v342
    %364 = vmatprep.subr.mxu0 0.0
    %365 = vmatpush1.msra.mxu0 %v341
    %366 = vmatprep.subr.mxu0 0.0
    %367 = vmatpush1.msra.mxu0 %v340
    %368 = vmatprep.subr.mxu0 0.0
    %369 = vmatpush1.msra.mxu0 %v339
    %370 = vmatprep.subr.mxu0 0.0
    %371 = vmatpush1.msra.mxu0 %v338
    %372 = vmatprep.subr.mxu0 0.0
    %373 = vmatpush1.msra.mxu0 %v337
    %374 = vmatprep.subr.mxu0 0.0
    %375 = vmatpush1.msra.mxu0 %v336
    %376 = vmatprep.subr.mxu0 0.0
    %377 = vmatpush1.msra.mxu0 %v335
    %378 = vmatprep.subr.mxu0 0.0
    %379 = vmatpush1.msra.mxu0 %v334
    %380 = vmatprep.subr.mxu0 0.0
    %381 = vmatpush1.msra.mxu0 %v333
    %382 = vmatprep.subr.mxu0 0.0
    %383 = vmatpush1.msra.mxu0 %v332
    %384 = vmatprep.subr.mxu0 0.0
    %385 = vmatpush1.msra.mxu0 %v331
    %386 = vmatprep.subr.mxu0 0.0
    %387 = vmatpush1.msra.mxu0 %v330
    %388 = vmatprep.subr.mxu0 0.0
    %389 = vmatpush1.msra.mxu0 %v329
    %390 = vmatprep.subr.mxu0 0.0
    %391 = vmatpush1.msra.mxu0 %v328
    %392 = vmatprep.subr.mxu0 0.0
    %393 = vmatpush2.msra.mxu0 %v359
    %394 = vmatprep.subr.mxu0 0.0
    %395 = vmatpush2.msra.mxu0 %v358
    %396 = vmatprep.subr.mxu0 0.0
    %397 = vmatpush2.msra.mxu0 %v357
    %398 = vmatprep.subr.mxu0 0.0
    %399 = vmatpush2.msra.mxu0 %v356
    %400 = vmatprep.subr.mxu0 0.0
    %401 = vmatpush2.msra.mxu0 %v355
    %402 = vmatprep.subr.mxu0 0.0
    %403 = vmatpush2.msra.mxu0 %v354
    %404 = vmatprep.subr.mxu0 0.0
    %405 = vmatpush2.msra.mxu0 %v353
    %406 = vmatprep.subr.mxu0 0.0
    %407 = vmatpush2.msra.mxu0 %v352
    %408 = vmatprep.subr.mxu0 0.0
    %409 = vmatpush2.msra.mxu0 %v351
    %410 = vmatprep.subr.mxu0 0.0
    %411 = vmatpush2.msra.mxu0 %v350
    %412 = vmatprep.subr.mxu0 0.0
    %413 = vmatpush2.msra.mxu0 %v349
    %414 = vmatprep.subr.mxu0 0.0
    %415 = vmatpush2.msra.mxu0 %v348
    %416 = vmatprep.subr.mxu0 0.0
    %417 = vmatpush2.msra.mxu0 %v347
    %418 = vmatprep.subr.mxu0 0.0
    %419 = vmatpush2.msra.mxu0 %v346
    %420 = vmatprep.subr.mxu0 0.0
    %421 = vmatpush2.msra.mxu0 %v345
    %422 = vmatprep.subr.mxu0 0.0
    %423 = vmatpush2.msra.mxu0 %v344
    %424 = vmatprep.mubr.f32.mxu0 %v327
    %425 = vmatmul.mubr.f32.gmra.mxu0 %v326
    %v426 = vpop.f32.mrf.mxu0
    %v427 = vadd.f32 0.0, %v426
    %v428 = vpop.f32.mrf.mxu0
    %429 = vdwg.mxu0
    %s430 = smul.f32 %s114, 0.0625
    %v431 = vstv %s430
    %v432 = vmul.f32 %v427, %v431
    %v433 = vunpack.c.l.bf16 %v170
    %v434 = vunpack.c.h.bf16 %v170
    %v435 = vunpack.c.l.bf16 %v171
    %v436 = vunpack.c.h.bf16 %v171
    %v437 = vunpack.c.l.bf16 %v172
    %v438 = vunpack.c.h.bf16 %v172
    %v439 = vunpack.c.l.bf16 %v173
    %v440 = vunpack.c.h.bf16 %v173
    %vm441 = vcmask 261120
    %v443 = vsel %vm441, %v432, 0
    %445 = vmatprep.subr.mxu0 0.0
    %446 = vmatpush1.msra.mxu0 0.0
    %447 = vmatprep.subr.mxu0 0.0
    %448 = vmatpush1.msra.mxu0 0.0
    %449 = vmatprep.subr.mxu0 0.0
    %450 = vmatpush1.msra.mxu0 0.0
    %451 = vmatprep.subr.mxu0 0.0
    %452 = vmatpush1.msra.mxu0 0.0
    %453 = vmatprep.subr.mxu0 0.0
    %454 = vmatpush1.msra.mxu0 0.0
    %455 = vmatprep.subr.mxu0 0.0
    %456 = vmatpush1.msra.mxu0 0.0
    %457 = vmatprep.subr.mxu0 0.0
    %458 = vmatpush1.msra.mxu0 0.0
    %459 = vmatprep.subr.mxu0 0.0
    %460 = vmatpush1.msra.mxu0 0.0
    %461 = vmatprep.subr.mxu0 0.0
    %462 = vmatpush1.msra.mxu0 0.0
    %463 = vmatprep.subr.mxu0 0.0
    %464 = vmatpush1.msra.mxu0 0.0
    %465 = vmatprep.subr.mxu0 0.0
    %466 = vmatpush1.msra.mxu0 0.0
    %467 = vmatprep.subr.mxu0 0.0
    %468 = vmatpush1.msra.mxu0 0.0
    %469 = vmatprep.subr.mxu0 %v440
    %470 = vmatpush1.msra.mxu0 %v439
    %471 = vmatprep.subr.mxu0 %v438
    %472 = vmatpush1.msra.mxu0 %v437
    %473 = vmatprep.subr.mxu0 %v436
    %474 = vmatpush1.msra.mxu0 %v435
    %475 = vmatprep.subr.mxu0 %v434
    %476 = vmatpush1.msra.mxu0 %v433
    %477 = vmatprep.subr.mxu0 0.0
    %478 = vmatpush2.msra.mxu0 0.0
    %479 = vmatprep.subr.mxu0 0.0
    %480 = vmatpush2.msra.mxu0 0.0
    %481 = vmatprep.subr.mxu0 0.0
    %482 = vmatpush2.msra.mxu0 0.0
    %483 = vmatprep.subr.mxu0 0.0
    %484 = vmatpush2.msra.mxu0 0.0
    %485 = vmatprep.subr.mxu0 0.0
    %486 = vmatpush2.msra.mxu0 0.0
    %487 = vmatprep.subr.mxu0 0.0
    %488 = vmatpush2.msra.mxu0 0.0
    %489 = vmatprep.subr.mxu0 0.0
    %490 = vmatpush2.msra.mxu0 0.0
    %491 = vmatprep.subr.mxu0 0.0
    %492 = vmatpush2.msra.mxu0 0.0
    %493 = vmatprep.subr.mxu0 0.0
    %494 = vmatpush2.msra.mxu0 0.0
    %495 = vmatprep.subr.mxu0 0.0
    %496 = vmatpush2.msra.mxu0 0.0
    %497 = vmatprep.subr.mxu0 0.0
    %498 = vmatpush2.msra.mxu0 0.0
    %499 = vmatprep.subr.mxu0 0.0
    %500 = vmatpush2.msra.mxu0 0.0
    %501 = vmatprep.subr.mxu0 0.0
    %502 = vmatpush2.msra.mxu0 0.0
    %503 = vmatprep.subr.mxu0 0.0
    %504 = vmatpush2.msra.mxu0 0.0
    %505 = vmatprep.subr.mxu0 0.0
    %506 = vmatpush2.msra.mxu0 0.0
    %507 = vmatprep.subr.mxu0 0.0
    %508 = vmatpush2.msra.mxu0 0.0
    %509 = vmatprep.mubr.f32.mxu0 0.0
    %510 = vmatmul.mubr.f32.gmra.mxu0 %v443
    %v511 = vpop.f32.mrf.mxu0
    %v512 = vadd.f32 0.0, %v511
    %v513 = vpop.f32.mrf.mxu0
    %v514 = vadd.f32 0.0, %v513
    %515 = vdwg.mxu0
    %v516 = vmul.f32 %v512, %v512
    %v517 = vmul.f32 %v514, %v514
    %v520 = vrot.slane %v516, 7
    %v521 = vrot.slane %v517, 7
    %v524 = vsub.f32 %v512, %v520
    %v525 = vsub.f32 %v514, %v521
    %v526 = vmax.f32 %v524, 0.0
    %v527 = vmax.f32 %v525, 0.0
    %v528 = vlaneseq
    %v529 = vshrl.u32 %v528, 7
    %v530 = vsub.s32 0, %v529
    %v531 = vrot.slane %v512, %v530
    %v532 = vlaneseq
    %v533 = vshrl.u32 %v532, 7
    %v534 = vsub.s32 0, %v533
    %v535 = vrot.slane %v514, %v534
    %v536 = vsub.f32 %v293, %v531
    %v537 = vsub.f32 %v295, %v535
    %v538 = vadd.f32 %v526, 1e-05
    %v539 = vadd.f32 %v527, 1e-05
    %v540 = vrsqrt.pop %v538
    %v541 = vrsqrt.pop %v539
    %v542 = vlaneseq
    %v543 = vshrl.u32 %v542, 7
    %v544 = vsub.s32 1, %v543
    %v545 = vrot.slane %v540, %v544
    %v546 = vlaneseq
    %v547 = vshrl.u32 %v546, 7
    %v548 = vsub.s32 1, %v547
    %v549 = vrot.slane %v541, %v548
    %v550 = vmul.f32 %v536, %v545
    %v551 = vmul.f32 %v537, %v549
    %v553 = vlaneseq
    %v554 = vshrl.u32 %v553, 7
    %v555 = vsub.s32 0, %v554
    %v556 = vrot.slane %v174, %v555
    %v557 = vlaneseq
    %v558 = vshrl.u32 %v557, 7
    %v559 = vsub.s32 1, %v558
    %v560 = vrot.slane %v174, %v559
    %v563 = vmul.f32 %v550, %v556
    %v564 = vmul.f32 %v551, %v560
    %v566 = vlaneseq
    %v567 = vshrl.u32 %v566, 7
    %v568 = vsub.s32 0, %v567
    %v569 = vrot.slane %v176, %v568
    %v570 = vlaneseq
    %v571 = vshrl.u32 %v570, 7
    %v572 = vsub.s32 1, %v571
    %v573 = vrot.slane %v176, %v572
    %v576 = vadd.f32 %v563, %v569
    %v577 = vadd.f32 %v564, %v573
    %v578 = vmax.f32 %v576, 0.0
    %v579 = vmax.f32 %v577, 0.0
    %v580 = vsel %vm120, 1, 0
    %vm581 = vcmp.eq.s32.totalorder %v580, 1
    %v582 = vsel %vm581, %v578, 0.0
    %v583 = vsel %vm581, %v579, 0.0
    %v584 = vld [vmem:[#allocation8] sm:$0xff]
    %v585 = vld [vmem:[#allocation8 + $0x8] sm:$0xf]
    %v586 = vld [vmem:[#allocation8 + $0xc] sm:$0xff]
    %v587 = vld [vmem:[#allocation8 + $0x14] sm:$0xf]
    %v588 = vld [vmem:[#allocation8 + $0x18] sm:$0xff]
    %v589 = vld [vmem:[#allocation8 + $0x20] sm:$0xf]
    %v590 = vld [vmem:[#allocation8 + $0x24] sm:$0xff]
    %v591 = vld [vmem:[#allocation8 + $0x2c] sm:$0xf]
    %v592 = vld [vmem:[#allocation8 + $0x30] sm:$0xff]
    %v593 = vld [vmem:[#allocation8 + $0x38] sm:$0xf]
    %v594 = vld [vmem:[#allocation8 + $0x3c] sm:$0xff]
    %v595 = vld [vmem:[#allocation8 + $0x44] sm:$0xf]
    %v596 = vld [vmem:[#allocation8 + $0x48] sm:$0xff]
    %v597 = vld [vmem:[#allocation8 + $0x50] sm:$0xf]
    %v598 = vld [vmem:[#allocation8 + $0x54] sm:$0xff]
    %v599 = vld [vmem:[#allocation8 + $0x5c] sm:$0xf]
    %v600 = vld [vmem:[#allocation8 + $0x60] sm:$0xff]
    %v601 = vld [vmem:[#allocation8 + $0x68] sm:$0xf]
    %v602 = vld [vmem:[#allocation8 + $0x6c] sm:$0xff]
    %v603 = vld [vmem:[#allocation8 + $0x74] sm:$0xf]
    %v604 = vld [vmem:[#allocation8 + $0x78] sm:$0xff]
    %v605 = vld [vmem:[#allocation8 + $0x80] sm:$0xf]
    %v606 = vld [vmem:[#allocation8 + $0x84] sm:$0xff]
    %v607 = vld [vmem:[#allocation8 + $0x8c] sm:$0xf]
    %v608 = vld [vmem:[#allocation8 + $0x90] sm:$0xff]
    %v609 = vld [vmem:[#allocation8 + $0x98] sm:$0xf]
    %v610 = vld [vmem:[#allocation8 + $0x9c] sm:$0xff]
    %v611 = vld [vmem:[#allocation8 + $0xa4] sm:$0xf]
    %v612 = vld [vmem:[#allocation8 + $0xa8] sm:$0xff]
    %v613 = vld [vmem:[#allocation8 + $0xb0] sm:$0xf]
    %v614 = vld [vmem:[#allocation8 + $0xb4] sm:$0xff]
    %v615 = vld [vmem:[#allocation8 + $0xbc] sm:$0xf]
    %v616 = vld [vmem:[#allocation8 + $0xc0] sm:$0xff]
    %v617 = vld [vmem:[#allocation8 + $0xc8] sm:$0xf]
    %v618 = vld [vmem:[#allocation8 + $0xcc] sm:$0xff]
    %v619 = vld [vmem:[#allocation8 + $0xd4] sm:$0xf]
    %v620 = vld [vmem:[#allocation8 + $0xd8] sm:$0xff]
    %v621 = vld [vmem:[#allocation8 + $0xe0] sm:$0xf]
    %v622 = vld [vmem:[#allocation8 + $0xe4] sm:$0xff]
    %v623 = vld [vmem:[#allocation8 + $0xec] sm:$0xf]
    %v624 = vld [vmem:[#allocation8 + $0xf0] sm:$0xff]
    %v625 = vld [vmem:[#allocation8 + $0xf8] sm:$0xf]
    %v626 = vld [vmem:[#allocation8 + $0xfc] sm:$0xff]
    %v627 = vld [vmem:[#allocation8 + $0x104] sm:$0xf]
    %v628 = vld [vmem:[#allocation8 + $0x108] sm:$0xff]
    %v629 = vld [vmem:[#allocation8 + $0x110] sm:$0xf]
    %v630 = vld [vmem:[#allocation8 + $0x114] sm:$0xff]
    %v631 = vld [vmem:[#allocation8 + $0x11c] sm:$0xf]
    %v632 = vld [vmem:[#allocation8 + $0x120] sm:$0xff]
    %v633 = vld [vmem:[#allocation8 + $0x128] sm:$0xf]
    %v634 = vld [vmem:[#allocation8 + $0x12c] sm:$0xff]
    %v635 = vld [vmem:[#allocation8 + $0x134] sm:$0xf]
    %v636 = vld [vmem:[#allocation8 + $0x138] sm:$0xff]
    %v637 = vld [vmem:[#allocation8 + $0x140] sm:$0xf]
    %v638 = vld [vmem:[#allocation8 + $0x144] sm:$0xff]
    %v639 = vld [vmem:[#allocation8 + $0x14c] sm:$0xf]
    %v640 = vld [vmem:[#allocation8 + $0x150] sm:$0xff]
    %v641 = vld [vmem:[#allocation8 + $0x158] sm:$0xf]
    %v642 = vld [vmem:[#allocation8 + $0x15c] sm:$0xff]
    %v643 = vld [vmem:[#allocation8 + $0x164] sm:$0xf]
    %v644 = vld [vmem:[#allocation8 + $0x168] sm:$0xff]
    %v645 = vld [vmem:[#allocation8 + $0x170] sm:$0xf]
    %v646 = vld [vmem:[#allocation8 + $0x174] sm:$0xff]
    %v647 = vld [vmem:[#allocation8 + $0x17c] sm:$0xf]
    %v648 = vld [vmem:[%s5 + $0x80] sm:$0xf]
    %v649 = vld [vmem:[%s5 + $0x84] sm:$0xf]
    %v650 = vld [vmem:[%s5 + $0x88] sm:$0xf]
    %v651 = vld [vmem:[%s5 + $0x8c] sm:$0xf]
    %v652 = vld [vmem:[%s5 + $0x90] sm:$0xf]
    %v653 = vld [vmem:[%s5 + $0x94] sm:$0xf]
    %v654 = vld [vmem:[%s5 + $0x98] sm:$0xf]
    %v655 = vld [vmem:[%s5 + $0x9c] sm:$0xf]
    %v656 = vld [vmem:[%s5 + $0xa0] sm:$0xf]
    %v657 = vld [vmem:[%s5 + $0xa4] sm:$0xf]
    %v658 = vld [vmem:[%s5 + $0xa8] sm:$0xf]
    %v659 = vld [vmem:[%s5 + $0xac] sm:$0xf]
    %v660 = vld [vmem:[%s5 + $0xb0] sm:$0xf]
    %v661 = vld [vmem:[%s5 + $0xb4] sm:$0xf]
    %v662 = vld [vmem:[%s5 + $0xb8] sm:$0xf]
    %v663 = vld [vmem:[%s5 + $0xbc] sm:$0xf]
    %v664 = vld [vmem:[%s5 + $0xc0] sm:$0xf]
    %v665 = vld [vmem:[%s5 + $0xc4] sm:$0xf]
    %v666 = vld [vmem:[%s5 + $0xc8] sm:$0xf]
    %v667 = vld [vmem:[%s5 + $0xcc] sm:$0xf]
    %v668 = vld [vmem:[%s5 + $0xd0] sm:$0xf]
    %v669 = vld [vmem:[%s5 + $0xd4] sm:$0xf]
    %v670 = vld [vmem:[%s5 + $0xd8] sm:$0xf]
    %v671 = vld [vmem:[%s5 + $0xdc] sm:$0xf]
    %v672 = vld [vmem:[%s5 + $0xe0] sm:$0xf]
    %v673 = vld [vmem:[%s5 + $0xe4] sm:$0xf]
    %v674 = vld [vmem:[%s5 + $0xe8] sm:$0xf]
    %v675 = vld [vmem:[%s5 + $0xec] sm:$0xf]
    %v676 = vld [vmem:[%s5 + $0xf0] sm:$0xf]
    %v677 = vld [vmem:[%s5 + $0xf4] sm:$0xf]
    %v678 = vld [vmem:[%s5 + $0xf8] sm:$0xf]
    %v679 = vld [vmem:[%s5 + $0xfc] sm:$0xf]
    %v680 = vld [vmem:[%s5 + $0x100] sm:$0xf]
    %v681 = vld [vmem:[%s5 + $0x104] sm:$0xf]
    %v682 = vld [vmem:[%s5 + $0x108] sm:$0xf]
    %v683 = vld [vmem:[%s5 + $0x10c] sm:$0xf]
    %v684 = vld [vmem:[%s5 + $0x110] sm:$0xf]
    %v685 = vld [vmem:[%s5 + $0x114] sm:$0xf]
    %v686 = vld [vmem:[%s5 + $0x118] sm:$0xf]
    %v687 = vld [vmem:[%s5 + $0x11c] sm:$0xf]
    %v688 = vld [vmem:[%s5 + $0x120] sm:$0xf]
    %v689 = vld [vmem:[%s5 + $0x124] sm:$0xf]
    %v690 = vld [vmem:[%s5 + $0x128] sm:$0xf]
    %v691 = vld [vmem:[%s5 + $0x12c] sm:$0xf]
    %v692 = vld [vmem:[%s5 + $0x130] sm:$0xf]
    %v693 = vld [vmem:[%s5 + $0x134] sm:$0xf]
    %v694 = vld [vmem:[%s5 + $0x138] sm:$0xf]
    %v695 = vld [vmem:[%s5 + $0x13c] sm:$0xf]
    %v696 = vld [vmem:[#allocation11 + $0x8] sm:$0xff]
    %v697 = vld [vmem:[#allocation11 + $0x10] sm:$0xf]
    %v698 = vld [vmem:[#allocation11 + $0x20] sm:$0xff]
    %v699 = vld [vmem:[#allocation11 + $0x28] sm:$0xf]
    %v700 = vld [vmem:[#allocation11 + $0x38] sm:$0xff]
    %v701 = vld [vmem:[#allocation11 + $0x40] sm:$0xf]
    %v702 = vld [vmem:[#allocation11 + $0x50] sm:$0xff]
    %v703 = vld [vmem:[#allocation11 + $0x58] sm:$0xf]
    %s704 = scalar_lea.vmem %s7, 2
    %v705 = vld [vmem:[%s704] ss:$8 sm:$0x7]
    %s706 = scalar_lea.vmem %s7, 3
    %v707 = vld [vmem:[%s706] ss:$8 sm:$0x7]
    %v708 = vpack.c.bf16 %v582, %v582
    %v709 = vpack.c.bf16 %v583, %v583
    %v774 = vunpack.c.l.b16 %v584
    %v775 = vunpack.c.h.b16 %v584
    %v776 = vunpack.c.l.b16 %v585
    %v777 = vunpack.c.l.b16 %v586
    %v778 = vunpack.c.h.b16 %v586
    %v779 = vunpack.c.l.b16 %v587
    %v780 = vunpack.c.l.b16 %v588
    %v781 = vunpack.c.h.b16 %v588
    %v782 = vunpack.c.l.b16 %v589
    %v783 = vunpack.c.l.b16 %v590
    %v784 = vunpack.c.h.b16 %v590
    %v785 = vunpack.c.l.b16 %v591
    %v786 = vunpack.c.l.b16 %v592
    %v787 = vunpack.c.h.b16 %v592
    %v788 = vunpack.c.l.b16 %v593
    %v789 = vunpack.c.l.b16 %v594
    %v790 = vunpack.c.h.b16 %v594
    %v791 = vunpack.c.l.b16 %v595
    %v792 = vunpack.c.l.b16 %v596
    %v793 = vunpack.c.h.b16 %v596
    %v794 = vunpack.c.l.b16 %v597
    %v795 = vunpack.c.l.b16 %v598
    %v796 = vunpack.c.h.b16 %v598
    %v797 = vunpack.c.l.b16 %v599
    %v798 = vunpack.c.l.b16 %v600
    %v799 = vunpack.c.h.b16 %v600
    %v800 = vunpack.c.l.b16 %v601
    %v801 = vunpack.c.l.b16 %v602
    %v802 = vunpack.c.h.b16 %v602
    %v803 = vunpack.c.l.b16 %v603
    %v804 = vunpack.c.l.b16 %v604
    %v805 = vunpack.c.h.b16 %v604
    %v806 = vunpack.c.l.b16 %v605
    %v807 = vunpack.c.l.b16 %v606
    %v808 = vunpack.c.h.b16 %v606
    %v809 = vunpack.c.l.b16 %v607
    %v810 = vunpack.c.l.b16 %v608
    %v811 = vunpack.c.h.b16 %v608
    %v812 = vunpack.c.l.b16 %v609
    %v813 = vunpack.c.l.b16 %v610
    %v814 = vunpack.c.h.b16 %v610
    %v815 = vunpack.c.l.b16 %v611
    %v816 = vunpack.c.l.b16 %v612
    %v817 = vunpack.c.h.b16 %v612
    %v818 = vunpack.c.l.b16 %v613
    %v819 = vunpack.c.l.b16 %v614
    %v820 = vunpack.c.h.b16 %v614
    %v821 = vunpack.c.l.b16 %v615
    %v822 = vunpack.c.l.b16 %v616
    %v823 = vunpack.c.h.b16 %v616
    %v824 = vunpack.c.l.b16 %v617
    %v825 = vunpack.c.l.b16 %v618
    %v826 = vunpack.c.h.b16 %v618
    %v827 = vunpack.c.l.b16 %v619
    %v828 = vunpack.c.l.b16 %v620
    %v829 = vunpack.c.h.b16 %v620
    %v830 = vunpack.c.l.b16 %v621
    %v831 = vunpack.c.l.b16 %v622
    %v832 = vunpack.c.h.b16 %v622
    %v833 = vunpack.c.l.b16 %v623
    %v834 = vunpack.c.l.b16 %v624
    %v835 = vunpack.c.h.b16 %v624
    %v836 = vunpack.c.l.b16 %v625
    %v837 = vunpack.c.l.b16 %v626
    %v838 = vunpack.c.h.b16 %v626
    %v839 = vunpack.c.l.b16 %v627
    %v840 = vunpack.c.l.b16 %v628
    %v841 = vunpack.c.h.b16 %v628
    %v842 = vunpack.c.l.b16 %v629
    %v843 = vunpack.c.l.b16 %v630
    %v844 = vunpack.c.h.b16 %v630
    %v845 = vunpack.c.l.b16 %v631
    %v846 = vunpack.c.l.b16 %v632
    %v847 = vunpack.c.h.b16 %v632
    %v848 = vunpack.c.l.b16 %v633
    %v849 = vunpack.c.l.b16 %v634
    %v850 = vunpack.c.h.b16 %v634
    %v851 = vunpack.c.l.b16 %v635
    %v852 = vunpack.c.l.b16 %v636
    %v853 = vunpack.c.h.b16 %v636
    %v854 = vunpack.c.l.b16 %v637
    %v855 = vunpack.c.l.b16 %v638
    %v856 = vunpack.c.h.b16 %v638
    %v857 = vunpack.c.l.b16 %v639
    %v858 = vunpack.c.l.b16 %v640
    %v859 = vunpack.c.h.b16 %v640
    %v860 = vunpack.c.l.b16 %v641
    %v861 = vunpack.c.l.b16 %v642
    %v862 = vunpack.c.h.b16 %v642
    %v863 = vunpack.c.l.b16 %v643
    %v864 = vunpack.c.l.b16 %v644
    %v865 = vunpack.c.h.b16 %v644
    %v866 = vunpack.c.l.b16 %v645
    %v867 = vunpack.c.l.b16 %v646
    %v868 = vunpack.c.h.b16 %v646
    %v869 = vunpack.c.l.b16 %v647
    %v870 = vpack.c.b16 %v777, %v774
    %v871 = vpack.c.b16 %v778, %v775
    %v872 = vpack.c.b16 %v779, %v776
    %v873 = vpack.c.b16 %v783, %v780
    %v874 = vpack.c.b16 %v784, %v781
    %v875 = vpack.c.b16 %v785, %v782
    %v876 = vpack.c.b16 %v789, %v786
    %v877 = vpack.c.b16 %v790, %v787
    %v878 = vpack.c.b16 %v791, %v788
    %v879 = vpack.c.b16 %v795, %v792
    %v880 = vpack.c.b16 %v796, %v793
    %v881 = vpack.c.b16 %v797, %v794
    %v882 = vpack.c.b16 %v801, %v798
    %v883 = vpack.c.b16 %v802, %v799
    %v884 = vpack.c.b16 %v803, %v800
    %v885 = vpack.c.b16 %v807, %v804
    %v886 = vpack.c.b16 %v808, %v805
    %v887 = vpack.c.b16 %v809, %v806
    %v888 = vpack.c.b16 %v813, %v810
    %v889 = vpack.c.b16 %v814, %v811
    %v890 = vpack.c.b16 %v815, %v812
    %v891 = vpack.c.b16 %v819, %v816
    %v892 = vpack.c.b16 %v820, %v817
    %v893 = vpack.c.b16 %v821, %v818
    %v894 = vpack.c.b16 %v825, %v822
    %v895 = vpack.c.b16 %v826, %v823
    %v896 = vpack.c.b16 %v827, %v824
    %v897 = vpack.c.b16 %v831, %v828
    %v898 = vpack.c.b16 %v832, %v829
    %v899 = vpack.c.b16 %v833, %v830
    %v900 = vpack.c.b16 %v837, %v834
    %v901 = vpack.c.b16 %v838, %v835
    %v902 = vpack.c.b16 %v839, %v836
    %v903 = vpack.c.b16 %v843, %v840
    %v904 = vpack.c.b16 %v844, %v841
    %v905 = vpack.c.b16 %v845, %v842
    %v906 = vpack.c.b16 %v849, %v846
    %v907 = vpack.c.b16 %v850, %v847
    %v908 = vpack.c.b16 %v851, %v848
    %v909 = vpack.c.b16 %v855, %v852
    %v910 = vpack.c.b16 %v856, %v853
    %v911 = vpack.c.b16 %v857, %v854
    %v912 = vpack.c.b16 %v861, %v858
    %v913 = vpack.c.b16 %v862, %v859
    %v914 = vpack.c.b16 %v863, %v860
    %v915 = vpack.c.b16 %v867, %v864
    %v916 = vpack.c.b16 %v868, %v865
    %v917 = vpack.c.b16 %v869, %v866
    %966 = vmatprep.subr.bf16.mxu0 %v892
    %967 = vmatpush1.bf16.msra.mxu0 %v891
    %968 = vmatprep.subr.bf16.mxu0 %v889
    %969 = vmatpush1.bf16.msra.mxu0 %v888
    %970 = vmatprep.subr.bf16.mxu0 %v886
    %971 = vmatpush1.bf16.msra.mxu0 %v885
    %972 = vmatprep.subr.bf16.mxu0 %v883
    %973 = vmatpush1.bf16.msra.mxu0 %v882
    %974 = vmatprep.subr.bf16.mxu0 %v880
    %975 = vmatpush1.bf16.msra.mxu0 %v879
    %976 = vmatprep.subr.bf16.mxu0 %v877
    %977 = vmatpush1.bf16.msra.mxu0 %v876
    %978 = vmatprep.subr.bf16.mxu0 %v874
    %979 = vmatpush1.bf16.msra.mxu0 %v873
    %980 = vmatprep.subr.bf16.mxu0 %v871
    %981 = vmatpush1.bf16.msra.mxu0 %v870
    %982 = vmatprep.subr.bf16.mxu0 %v916
    %983 = vmatpush2.bf16.msra.mxu0 %v915
    %984 = vmatprep.subr.bf16.mxu0 %v913
    %985 = vmatpush2.bf16.msra.mxu0 %v912
    %986 = vmatprep.subr.bf16.mxu0 %v910
    %987 = vmatpush2.bf16.msra.mxu0 %v909
    %988 = vmatprep.subr.bf16.mxu0 %v907
    %989 = vmatpush2.bf16.msra.mxu0 %v906
    %990 = vmatprep.subr.bf16.mxu0 %v904
    %991 = vmatpush2.bf16.msra.mxu0 %v903
    %992 = vmatprep.subr.bf16.mxu0 %v901
    %993 = vmatpush2.bf16.msra.mxu0 %v900
    %994 = vmatprep.subr.bf16.mxu0 %v898
    %995 = vmatpush2.bf16.msra.mxu0 %v897
    %996 = vmatprep.subr.bf16.mxu0 %v895
    %997 = vmatpush2.bf16.msra.mxu0 %v894
    %998 = vmatprep.mubr.bf16.mxu0 %v709
    %999 = vmatmul.mubr.bf16.gmra.mxu0 %v708
    %v1000 = vpop.f32.mrf.mxu0
    %v1001 = vadd.f32 0.0, %v1000
    %v1002 = vpop.f32.mrf.mxu0
    %v1003 = vadd.f32 0.0, %v1002
    %v1004 = vpop.f32.mrf.mxu0
    %v1005 = vpop.f32.mrf.mxu0
    %1006 = vdwg.mxu0
    %1007 = vmatprep.subr.bf16.mxu0 0
    %1008 = vmatpush1.bf16.msra.mxu0 %v893
    %1009 = vmatprep.subr.bf16.mxu0 0
    %1010 = vmatpush1.bf16.msra.mxu0 %v890
    %1011 = vmatprep.subr.bf16.mxu0 0
    %1012 = vmatpush1.bf16.msra.mxu0 %v887
    %1013 = vmatprep.subr.bf16.mxu0 0
    %1014 = vmatpush1.bf16.msra.mxu0 %v884
    %1015 = vmatprep.subr.bf16.mxu0 0
    %1016 = vmatpush1.bf16.msra.mxu0 %v881
    %1017 = vmatprep.subr.bf16.mxu0 0
    %1018 = vmatpush1.bf16.msra.mxu0 %v878
    %1019 = vmatprep.subr.bf16.mxu0 0
    %1020 = vmatpush1.bf16.msra.mxu0 %v875
    %1021 = vmatprep.subr.bf16.mxu0 0
    %1022 = vmatpush1.bf16.msra.mxu0 %v872
    %1023 = vmatprep.subr.bf16.mxu0 0
    %1024 = vmatpush2.bf16.msra.mxu0 %v917
    %1025 = vmatprep.subr.bf16.mxu0 0
    %1026 = vmatpush2.bf16.msra.mxu0 %v914
    %1027 = vmatprep.subr.bf16.mxu0 0
    %1028 = vmatpush2.bf16.msra.mxu0 %v911
    %1029 = vmatprep.subr.bf16.mxu0 0
    %1030 = vmatpush2.bf16.msra.mxu0 %v908
    %1031 = vmatprep.subr.bf16.mxu0 0
    %1032 = vmatpush2.bf16.msra.mxu0 %v905
    %1033 = vmatprep.subr.bf16.mxu0 0
    %1034 = vmatpush2.bf16.msra.mxu0 %v902
    %1035 = vmatprep.subr.bf16.mxu0 0
    %1036 = vmatpush2.bf16.msra.mxu0 %v899
    %1037 = vmatprep.subr.bf16.mxu0 0
    %1038 = vmatpush2.bf16.msra.mxu0 %v896
    %1039 = vmatprep.mubr.bf16.mxu0 %v709
    %1040 = vmatmul.mubr.bf16.gmra.mxu0 %v708
    %v1041 = vpop.f32.mrf.mxu0
    %v1042 = vadd.f32 0.0, %v1041
    %v1043 = vpop.f32.mrf.mxu0
    %v1044 = vpop.f32.mrf.mxu0
    %v1045 = vpop.f32.mrf.mxu0
    %1046 = vdwg.mxu0
    %v1047 = vrot.slane %v1001, 4
    %v1048 = vadd.f32 %v1001, %v1047
    %v1049 = vrot.slane %v1048, 2
    %v1050 = vadd.f32 %v1048, %v1049
    %v1051 = vrot.slane %v1050, 1
    %v1052 = vadd.f32 %v1050, %v1051
    %v1053 = vrot.slane %v1003, 4
    %v1054 = vadd.f32 %v1003, %v1053
    %v1055 = vrot.slane %v1054, 2
    %v1056 = vadd.f32 %v1054, %v1055
    %v1057 = vrot.slane %v1056, 1
    %v1058 = vadd.f32 %v1056, %v1057
    %v1059 = vrot.slane %v1042, 4
    %v1060 = vadd.f32 %v1042, %v1059
    %v1061 = vrot.slane %v1060, 2
    %v1062 = vadd.f32 %v1060, %v1061
    %v1063 = vrot.slane %v1062, 1
    %v1064 = vadd.f32 %v1062, %v1063
    %v1065 = vmul.f32 %v1001, %v1001
    %v1066 = vmul.f32 %v1003, %v1003
    %v1067 = vmul.f32 %v1042, %v1042
    %v1068 = vrot.slane %v1065, 4
    %v1069 = vadd.f32 %v1065, %v1068
    %v1070 = vrot.slane %v1069, 2
    %v1071 = vadd.f32 %v1069, %v1070
    %v1072 = vrot.slane %v1071, 1
    %v1073 = vadd.f32 %v1071, %v1072
    %v1074 = vrot.slane %v1066, 4
    %v1075 = vadd.f32 %v1066, %v1074
    %v1076 = vrot.slane %v1075, 2
    %v1077 = vadd.f32 %v1075, %v1076
    %v1078 = vrot.slane %v1077, 1
    %v1079 = vadd.f32 %v1077, %v1078
    %v1080 = vrot.slane %v1067, 4
    %v1081 = vadd.f32 %v1067, %v1080
    %v1082 = vrot.slane %v1081, 2
    %v1083 = vadd.f32 %v1081, %v1082
    %v1084 = vrot.slane %v1083, 1
    %v1085 = vadd.f32 %v1083, %v1084
    %v1086 = vsel %vm325, %v1052, %v1073
    %v1087 = vsel %vm325, %v1058, %v1079
    %v1088 = vsel %vm325, %v1064, %v1085
    %v1089 = vunpack.c.l.bf16 %v648
    %v1090 = vunpack.c.l.bf16 %v649
    %v1091 = vunpack.c.l.bf16 %v650
    %v1092 = vunpack.c.l.bf16 %v651
    %v1093 = vunpack.c.l.bf16 %v652
    %v1094 = vunpack.c.l.bf16 %v653
    %v1095 = vunpack.c.l.bf16 %v654
    %v1096 = vunpack.c.l.bf16 %v655
    %v1097 = vunpack.c.l.bf16 %v656
    %v1098 = vunpack.c.l.bf16 %v657
    %v1099 = vunpack.c.l.bf16 %v658
    %v1100 = vunpack.c.l.bf16 %v659
    %v1101 = vunpack.c.l.bf16 %v660
    %v1102 = vunpack.c.l.bf16 %v661
    %v1103 = vunpack.c.l.bf16 %v662
    %v1104 = vunpack.c.l.bf16 %v663
    %v1105 = vunpack.c.l.bf16 %v664
    %v1106 = vunpack.c.l.bf16 %v665
    %v1107 = vunpack.c.l.bf16 %v666
    %v1108 = vunpack.c.l.bf16 %v667
    %v1109 = vunpack.c.l.bf16 %v668
    %v1110 = vunpack.c.l.bf16 %v669
    %v1111 = vunpack.c.l.bf16 %v670
    %v1112 = vunpack.c.l.bf16 %v671
    %v1113 = vunpack.c.l.bf16 %v672
    %v1114 = vunpack.c.l.bf16 %v673
    %v1115 = vunpack.c.l.bf16 %v674
    %v1116 = vunpack.c.l.bf16 %v675
    %v1117 = vunpack.c.l.bf16 %v676
    %v1118 = vunpack.c.l.bf16 %v677
    %v1119 = vunpack.c.l.bf16 %v678
    %v1120 = vunpack.c.l.bf16 %v679
    %v1121 = vunpack.c.l.bf16 %v680
    %v1122 = vunpack.c.l.bf16 %v681
    %v1123 = vunpack.c.l.bf16 %v682
    %v1124 = vunpack.c.l.bf16 %v683
    %v1125 = vunpack.c.l.bf16 %v684
    %v1126 = vunpack.c.l.bf16 %v685
    %v1127 = vunpack.c.l.bf16 %v686
    %v1128 = vunpack.c.l.bf16 %v687
    %v1129 = vunpack.c.l.bf16 %v688
    %v1130 = vunpack.c.l.bf16 %v689
    %v1131 = vunpack.c.l.bf16 %v690
    %v1132 = vunpack.c.l.bf16 %v691
    %v1133 = vunpack.c.l.bf16 %v692
    %v1134 = vunpack.c.l.bf16 %v693
    %v1135 = vunpack.c.l.bf16 %v694
    %v1136 = vunpack.c.l.bf16 %v695
    %1137 = vmatprep.subr.mxu0 0.0
    %1138 = vmatpush1.msra.mxu0 %v1104
    %1139 = vmatprep.subr.mxu0 0.0
    %1140 = vmatpush1.msra.mxu0 %v1103
    %1141 = vmatprep.subr.mxu0 0.0
    %1142 = vmatpush1.msra.mxu0 %v1102
    %1143 = vmatprep.subr.mxu0 0.0
    %1144 = vmatpush1.msra.mxu0 %v1101
    %1145 = vmatprep.subr.mxu0 0.0
    %1146 = vmatpush1.msra.mxu0 %v1100
    %1147 = vmatprep.subr.mxu0 0.0
    %1148 = vmatpush1.msra.mxu0 %v1099
    %1149 = vmatprep.subr.mxu0 0.0
    %1150 = vmatpush1.msra.mxu0 %v1098
    %1151 = vmatprep.subr.mxu0 0.0
    %1152 = vmatpush1.msra.mxu0 %v1097
    %1153 = vmatprep.subr.mxu0 0.0
    %1154 = vmatpush1.msra.mxu0 %v1096
    %1155 = vmatprep.subr.mxu0 0.0
    %1156 = vmatpush1.msra.mxu0 %v1095
    %1157 = vmatprep.subr.mxu0 0.0
    %1158 = vmatpush1.msra.mxu0 %v1094
    %1159 = vmatprep.subr.mxu0 0.0
    %1160 = vmatpush1.msra.mxu0 %v1093
    %1161 = vmatprep.subr.mxu0 0.0
    %1162 = vmatpush1.msra.mxu0 %v1092
    %1163 = vmatprep.subr.mxu0 0.0
    %1164 = vmatpush1.msra.mxu0 %v1091
    %1165 = vmatprep.subr.mxu0 0.0
    %1166 = vmatpush1.msra.mxu0 %v1090
    %1167 = vmatprep.subr.mxu0 0.0
    %1168 = vmatpush1.msra.mxu0 %v1089
    %1169 = vmatprep.subr.mxu0 0.0
    %1170 = vmatpush2.msra.mxu0 %v1120
    %1171 = vmatprep.subr.mxu0 0.0
    %1172 = vmatpush2.msra.mxu0 %v1119
    %1173 = vmatprep.subr.mxu0 0.0
    %1174 = vmatpush2.msra.mxu0 %v1118
    %1175 = vmatprep.subr.mxu0 0.0
    %1176 = vmatpush2.msra.mxu0 %v1117
    %1177 = vmatprep.subr.mxu0 0.0
    %1178 = vmatpush2.msra.mxu0 %v1116
    %1179 = vmatprep.subr.mxu0 0.0
    %1180 = vmatpush2.msra.mxu0 %v1115
    %1181 = vmatprep.subr.mxu0 0.0
    %1182 = vmatpush2.msra.mxu0 %v1114
    %1183 = vmatprep.subr.mxu0 0.0
    %1184 = vmatpush2.msra.mxu0 %v1113
    %1185 = vmatprep.subr.mxu0 0.0
    %1186 = vmatpush2.msra.mxu0 %v1112
    %1187 = vmatprep.subr.mxu0 0.0
    %1188 = vmatpush2.msra.mxu0 %v1111
    %1189 = vmatprep.subr.mxu0 0.0
    %1190 = vmatpush2.msra.mxu0 %v1110
    %1191 = vmatprep.subr.mxu0 0.0
    %1192 = vmatpush2.msra.mxu0 %v1109
    %1193 = vmatprep.subr.mxu0 0.0
    %1194 = vmatpush2.msra.mxu0 %v1108
    %1195 = vmatprep.subr.mxu0 0.0
    %1196 = vmatpush2.msra.mxu0 %v1107
    %1197 = vmatprep.subr.mxu0 0.0
    %1198 = vmatpush2.msra.mxu0 %v1106
    %1199 = vmatprep.subr.mxu0 0.0
    %1200 = vmatpush2.msra.mxu0 %v1105
    %1201 = vmatprep.mubr.f32.mxu0 %v1087
    %1202 = vmatmul.mubr.f32.gmra.mxu0 %v1086
    %v1203 = vpop.f32.mrf.mxu0
    %v1204 = vadd.f32 0.0, %v1203
    %v1205 = vpop.f32.mrf.mxu0
    %1206 = vdwg.mxu0
    %1207 = vmatprep.subr.mxu0 0.0
    %1208 = vmatpush1.msra.mxu0 %v1136
    %1209 = vmatprep.subr.mxu0 0.0
    %1210 = vmatpush1.msra.mxu0 %v1135
    %1211 = vmatprep.subr.mxu0 0.0
    %1212 = vmatpush1.msra.mxu0 %v1134
    %1213 = vmatprep.subr.mxu0 0.0
    %1214 = vmatpush1.msra.mxu0 %v1133
    %1215 = vmatprep.subr.mxu0 0.0
    %1216 = vmatpush1.msra.mxu0 %v1132
    %1217 = vmatprep.subr.mxu0 0.0
    %1218 = vmatpush1.msra.mxu0 %v1131
    %1219 = vmatprep.subr.mxu0 0.0
    %1220 = vmatpush1.msra.mxu0 %v1130
    %1221 = vmatprep.subr.mxu0 0.0
    %1222 = vmatpush1.msra.mxu0 %v1129
    %1223 = vmatprep.subr.mxu0 0.0
    %1224 = vmatpush1.msra.mxu0 %v1128
    %1225 = vmatprep.subr.mxu0 0.0
    %1226 = vmatpush1.msra.mxu0 %v1127
    %1227 = vmatprep.subr.mxu0 0.0
    %1228 = vmatpush1.msra.mxu0 %v1126
    %1229 = vmatprep.subr.mxu0 0.0
    %1230 = vmatpush1.msra.mxu0 %v1125
    %1231 = vmatprep.subr.mxu0 0.0
    %1232 = vmatpush1.msra.mxu0 %v1124
    %1233 = vmatprep.subr.mxu0 0.0
    %1234 = vmatpush1.msra.mxu0 %v1123
    %1235 = vmatprep.subr.mxu0 0.0
    %1236 = vmatpush1.msra.mxu0 %v1122
    %1237 = vmatprep.subr.mxu0 0.0
    %1238 = vmatpush1.msra.mxu0 %v1121
    %1239 = vmatprep.subr.mxu0 0.0
    %1240 = vmatpush2.msra.mxu0 0.0
    %1241 = vmatprep.subr.mxu0 0.0
    %1242 = vmatpush2.msra.mxu0 0.0
    %1243 = vmatprep.subr.mxu0 0.0
    %1244 = vmatpush2.msra.mxu0 0.0
    %1245 = vmatprep.subr.mxu0 0.0
    %1246 = vmatpush2.msra.mxu0 0.0
    %1247 = vmatprep.subr.mxu0 0.0
    %1248 = vmatpush2.msra.mxu0 0.0
    %1249 = vmatprep.subr.mxu0 0.0
    %1250 = vmatpush2.msra.mxu0 0.0
    %1251 = vmatprep.subr.mxu0 0.0
    %1252 = vmatpush2.msra.mxu0 0.0
    %1253 = vmatprep.subr.mxu0 0.0
    %1254 = vmatpush2.msra.mxu0 0.0
    %1255 = vmatprep.subr.mxu0 0.0
    %1256 = vmatpush2.msra.mxu0 0.0
    %1257 = vmatprep.subr.mxu0 0.0
    %1258 = vmatpush2.msra.mxu0 0.0
    %1259 = vmatprep.subr.mxu0 0.0
    %1260 = vmatpush2.msra.mxu0 0.0
    %1261 = vmatprep.subr.mxu0 0.0
    %1262 = vmatpush2.msra.mxu0 0.0
    %1263 = vmatprep.subr.mxu0 0.0
    %1264 = vmatpush2.msra.mxu0 0.0
    %1265 = vmatprep.subr.mxu0 0.0
    %1266 = vmatpush2.msra.mxu0 0.0
    %1267 = vmatprep.subr.mxu0 0.0
    %1268 = vmatpush2.msra.mxu0 0.0
    %1269 = vmatprep.subr.mxu0 0.0
    %1270 = vmatpush2.msra.mxu0 0.0
    %1271 = vmatprep.mubr.f32.mxu0 0.0
    %1272 = vmatmul.mubr.f32.gmra.mxu0 %v1088
    %v1273 = vpop.f32.mrf.mxu0
    %v1274 = vadd.f32 %v1204, %v1273
    %v1275 = vpop.f32.mrf.mxu0
    %1276 = vdwg.mxu0
    %s1277 = smul.f32 %s114, 0.11111111
    %v1278 = vstv %s1277
    %v1279 = vmul.f32 %v1274, %v1278
    %v1280 = vunpack.c.l.bf16 %v696
    %v1281 = vunpack.c.h.bf16 %v696
    %v1282 = vunpack.c.l.bf16 %v697
    %v1283 = vunpack.c.l.bf16 %v698
    %v1284 = vunpack.c.h.bf16 %v698
    %v1285 = vunpack.c.l.bf16 %v699
    %v1286 = vunpack.c.l.bf16 %v700
    %v1287 = vunpack.c.h.bf16 %v700
    %v1288 = vunpack.c.l.bf16 %v701
    %v1289 = vunpack.c.l.bf16 %v702
    %v1290 = vunpack.c.h.bf16 %v702
    %v1291 = vunpack.c.l.bf16 %v703
    %v1293 = vsel %vm441, %v1279, 0
    %1295 = vmatprep.subr.mxu0 0.0
    %1296 = vmatpush1.msra.mxu0 0.0
    %1297 = vmatprep.subr.mxu0 0.0
    %1298 = vmatpush1.msra.mxu0 0.0
    %1299 = vmatprep.subr.mxu0 0.0
    %1300 = vmatpush1.msra.mxu0 0.0
    %1301 = vmatprep.subr.mxu0 0.0
    %1302 = vmatpush1.msra.mxu0 0.0
    %1303 = vmatprep.subr.mxu0 0.0
    %1304 = vmatpush1.msra.mxu0 0.0
    %1305 = vmatprep.subr.mxu0 0.0
    %1306 = vmatpush1.msra.mxu0 0.0
    %1307 = vmatprep.subr.mxu0 0.0
    %1308 = vmatpush1.msra.mxu0 0.0
    %1309 = vmatprep.subr.mxu0 0.0
    %1310 = vmatpush1.msra.mxu0 0.0
    %1311 = vmatprep.subr.mxu0 0.0
    %1312 = vmatpush1.msra.mxu0 0.0
    %1313 = vmatprep.subr.mxu0 0.0
    %1314 = vmatpush1.msra.mxu0 0.0
    %1315 = vmatprep.subr.mxu0 0.0
    %1316 = vmatpush1.msra.mxu0 0.0
    %1317 = vmatprep.subr.mxu0 0.0
    %1318 = vmatpush1.msra.mxu0 0.0
    %1319 = vmatprep.subr.mxu0 %v1290
    %1320 = vmatpush1.msra.mxu0 %v1289
    %1321 = vmatprep.subr.mxu0 %v1287
    %1322 = vmatpush1.msra.mxu0 %v1286
    %1323 = vmatprep.subr.mxu0 %v1284
    %1324 = vmatpush1.msra.mxu0 %v1283
    %1325 = vmatprep.subr.mxu0 %v1281
    %1326 = vmatpush1.msra.mxu0 %v1280
    %1327 = vmatprep.subr.mxu0 0.0
    %1328 = vmatpush2.msra.mxu0 0.0
    %1329 = vmatprep.subr.mxu0 0.0
    %1330 = vmatpush2.msra.mxu0 0.0
    %1331 = vmatprep.subr.mxu0 0.0
    %1332 = vmatpush2.msra.mxu0 0.0
    %1333 = vmatprep.subr.mxu0 0.0
    %1334 = vmatpush2.msra.mxu0 0.0
    %1335 = vmatprep.subr.mxu0 0.0
    %1336 = vmatpush2.msra.mxu0 0.0
    %1337 = vmatprep.subr.mxu0 0.0
    %1338 = vmatpush2.msra.mxu0 0.0
    %1339 = vmatprep.subr.mxu0 0.0
    %1340 = vmatpush2.msra.mxu0 0.0
    %1341 = vmatprep.subr.mxu0 0.0
    %1342 = vmatpush2.msra.mxu0 0.0
    %1343 = vmatprep.subr.mxu0 0.0
    %1344 = vmatpush2.msra.mxu0 0.0
    %1345 = vmatprep.subr.mxu0 0.0
    %1346 = vmatpush2.msra.mxu0 0.0
    %1347 = vmatprep.subr.mxu0 0.0
    %1348 = vmatpush2.msra.mxu0 0.0
    %1349 = vmatprep.subr.mxu0 0.0
    %1350 = vmatpush2.msra.mxu0 0.0
    %1351 = vmatprep.subr.mxu0 0.0
    %1352 = vmatpush2.msra.mxu0 0.0
    %1353 = vmatprep.subr.mxu0 0.0
    %1354 = vmatpush2.msra.mxu0 0.0
    %1355 = vmatprep.subr.mxu0 0.0
    %1356 = vmatpush2.msra.mxu0 0.0
    %1357 = vmatprep.subr.mxu0 0.0
    %1358 = vmatpush2.msra.mxu0 0.0
    %1359 = vmatprep.mubr.f32.mxu0 0.0
    %1360 = vmatmul.mubr.f32.gmra.mxu0 %v1293
    %v1361 = vpop.f32.mrf.mxu0
    %v1362 = vadd.f32 0.0, %v1361
    %v1363 = vpop.f32.mrf.mxu0
    %v1364 = vadd.f32 0.0, %v1363
    %1365 = vdwg.mxu0
    %1366 = vmatprep.subr.mxu0 0.0
    %1367 = vmatpush1.msra.mxu0 0.0
    %1368 = vmatprep.subr.mxu0 0.0
    %1369 = vmatpush1.msra.mxu0 0.0
    %1370 = vmatprep.subr.mxu0 0.0
    %1371 = vmatpush1.msra.mxu0 0.0
    %1372 = vmatprep.subr.mxu0 0.0
    %1373 = vmatpush1.msra.mxu0 0.0
    %1374 = vmatprep.subr.mxu0 0.0
    %1375 = vmatpush1.msra.mxu0 0.0
    %1376 = vmatprep.subr.mxu0 0.0
    %1377 = vmatpush1.msra.mxu0 0.0
    %1378 = vmatprep.subr.mxu0 0.0
    %1379 = vmatpush1.msra.mxu0 0.0
    %1380 = vmatprep.subr.mxu0 0.0
    %1381 = vmatpush1.msra.mxu0 0.0
    %1382 = vmatprep.subr.mxu0 0.0
    %1383 = vmatpush1.msra.mxu0 0.0
    %1384 = vmatprep.subr.mxu0 0.0
    %1385 = vmatpush1.msra.mxu0 0.0
    %1386 = vmatprep.subr.mxu0 0.0
    %1387 = vmatpush1.msra.mxu0 0.0
    %1388 = vmatprep.subr.mxu0 0.0
    %1389 = vmatpush1.msra.mxu0 0.0
    %1390 = vmatprep.subr.mxu0 0.0
    %1391 = vmatpush1.msra.mxu0 %v1291
    %1392 = vmatprep.subr.mxu0 0.0
    %1393 = vmatpush1.msra.mxu0 %v1288
    %1394 = vmatprep.subr.mxu0 0.0
    %1395 = vmatpush1.msra.mxu0 %v1285
    %1396 = vmatprep.subr.mxu0 0.0
    %1397 = vmatpush1.msra.mxu0 %v1282
    %1398 = vmatprep.subr.mxu0 0.0
    %1399 = vmatpush2.msra.mxu0 0.0
    %1400 = vmatprep.subr.mxu0 0.0
    %1401 = vmatpush2.msra.mxu0 0.0
    %1402 = vmatprep.subr.mxu0 0.0
    %1403 = vmatpush2.msra.mxu0 0.0
    %1404 = vmatprep.subr.mxu0 0.0
    %1405 = vmatpush2.msra.mxu0 0.0
    %1406 = vmatprep.subr.mxu0 0.0
    %1407 = vmatpush2.msra.mxu0 0.0
    %1408 = vmatprep.subr.mxu0 0.0
    %1409 = vmatpush2.msra.mxu0 0.0
    %1410 = vmatprep.subr.mxu0 0.0
    %1411 = vmatpush2.msra.mxu0 0.0
    %1412 = vmatprep.subr.mxu0 0.0
    %1413 = vmatpush2.msra.mxu0 0.0
    %1414 = vmatprep.subr.mxu0 0.0
    %1415 = vmatpush2.msra.mxu0 0.0
    %1416 = vmatprep.subr.mxu0 0.0
    %1417 = vmatpush2.msra.mxu0 0.0
    %1418 = vmatprep.subr.mxu0 0.0
    %1419 = vmatpush2.msra.mxu0 0.0
    %1420 = vmatprep.subr.mxu0 0.0
    %1421 = vmatpush2.msra.mxu0 0.0
    %1422 = vmatprep.subr.mxu0 0.0
    %1423 = vmatpush2.msra.mxu0 0.0
    %1424 = vmatprep.subr.mxu0 0.0
    %1425 = vmatpush2.msra.mxu0 0.0
    %1426 = vmatprep.subr.mxu0 0.0
    %1427 = vmatpush2.msra.mxu0 0.0
    %1428 = vmatprep.subr.mxu0 0.0
    %1429 = vmatpush2.msra.mxu0 0.0
    %1430 = vmatprep.mubr.f32.mxu0 0.0
    %1431 = vmatmul.mubr.f32.gmra.mxu0 %v1293
    %v1432 = vpop.f32.mrf.mxu0
    %v1433 = vadd.f32 0.0, %v1432
    %v1434 = vpop.f32.mrf.mxu0
    %1435 = vdwg.mxu0
    %v1436 = vmul.f32 %v1362, %v1362
    %v1437 = vmul.f32 %v1364, %v1364
    %v1438 = vmul.f32 %v1433, %v1433
    %v1442 = vrot.slane %v1436, 7
    %v1443 = vrot.slane %v1437, 7
    %v1444 = vrot.slane %v1438, 7
    %v1448 = vsub.f32 %v1362, %v1442
    %v1449 = vsub.f32 %v1364, %v1443
    %v1450 = vsub.f32 %v1433, %v1444
    %v1451 = vmax.f32 %v1448, 0.0
    %v1452 = vmax.f32 %v1449, 0.0
    %v1453 = vmax.f32 %v1450, 0.0
    %v1454 = vlaneseq
    %v1455 = vshrl.u32 %v1454, 7
    %v1456 = vsub.s32 0, %v1455
    %v1457 = vrot.slane %v1362, %v1456
    %v1458 = vlaneseq
    %v1459 = vshrl.u32 %v1458, 7
    %v1460 = vsub.s32 0, %v1459
    %v1461 = vrot.slane %v1364, %v1460
    %v1462 = vlaneseq
    %v1463 = vshrl.u32 %v1462, 7
    %v1464 = vsub.s32 0, %v1463
    %v1465 = vrot.slane %v1433, %v1464
    %v1466 = vsub.f32 %v1001, %v1457
    %v1467 = vsub.f32 %v1003, %v1461
    %v1468 = vsub.f32 %v1042, %v1465
    %v1469 = vadd.f32 %v1451, 1e-05
    %v1470 = vadd.f32 %v1452, 1e-05
    %v1471 = vadd.f32 %v1453, 1e-05
    %v1472 = vrsqrt.pop %v1469
    %v1473 = vrsqrt.pop %v1470
    %v1474 = vrsqrt.pop %v1471
    %v1475 = vlaneseq
    %v1476 = vshrl.u32 %v1475, 7
    %v1477 = vsub.s32 1, %v1476
    %v1478 = vrot.slane %v1472, %v1477
    %v1479 = vlaneseq
    %v1480 = vshrl.u32 %v1479, 7
    %v1481 = vsub.s32 1, %v1480
    %v1482 = vrot.slane %v1473, %v1481
    %v1483 = vlaneseq
    %v1484 = vshrl.u32 %v1483, 7
    %v1485 = vsub.s32 1, %v1484
    %v1486 = vrot.slane %v1474, %v1485
    %v1487 = vmul.f32 %v1466, %v1478
    %v1488 = vmul.f32 %v1467, %v1482
    %v1489 = vmul.f32 %v1468, %v1486
    %v1491 = vlaneseq
    %v1492 = vshrl.u32 %v1491, 7
    %v1493 = vsub.s32 0, %v1492
    %v1494 = vrot.slane %v705, %v1493
    %v1495 = vlaneseq
    %v1496 = vshrl.u32 %v1495, 7
    %v1497 = vsub.s32 1, %v1496
    %v1498 = vrot.slane %v705, %v1497
    %v1499 = vlaneseq
    %v1500 = vshrl.u32 %v1499, 7
    %v1501 = vsub.s32 2, %v1500
    %v1502 = vrot.slane %v705, %v1501
    %v1506 = vmul.f32 %v1487, %v1494
    %v1507 = vmul.f32 %v1488, %v1498
    %v1508 = vmul.f32 %v1489, %v1502
    %v1510 = vlaneseq
    %v1511 = vshrl.u32 %v1510, 7
    %v1512 = vsub.s32 0, %v1511
    %v1513 = vrot.slane %v707, %v1512
    %v1514 = vlaneseq
    %v1515 = vshrl.u32 %v1514, 7
    %v1516 = vsub.s32 1, %v1515
    %v1517 = vrot.slane %v707, %v1516
    %v1518 = vlaneseq
    %v1519 = vshrl.u32 %v1518, 7
    %v1520 = vsub.s32 2, %v1519
    %v1521 = vrot.slane %v707, %v1520
    %v1525 = vadd.f32 %v1506, %v1513
    %v1526 = vadd.f32 %v1507, %v1517
    %v1527 = vadd.f32 %v1508, %v1521
    %v1528 = vmax.f32 %v1525, 0.0
    %v1529 = vmax.f32 %v1526, 0.0
    %v1530 = vmax.f32 %v1527, 0.0
    %v1531 = vsel %vm581, %v1528, 0.0
    %v1532 = vsel %vm581, %v1529, 0.0
    %v1533 = vsel %vm581, %v1530, 0.0
    %v1534 = vld [vmem:[%s3] sm:$0xf]
    %v1535 = vld [vmem:[%s3 + $0x4] sm:$0xf]
    %v1536 = vld [vmem:[%s3 + $0x8] sm:$0xf]
    %v1537 = vld [vmem:[%s3 + $0xc] sm:$0xf]
    %v1538 = vld [vmem:[%s3 + $0x10] sm:$0xf]
    %v1539 = vld [vmem:[%s3 + $0x14] sm:$0xf]
    %v1540 = vld [vmem:[%s3 + $0x18] sm:$0xf]
    %v1541 = vld [vmem:[%s3 + $0x1c] sm:$0xf]
    %v1542 = vld [vmem:[%s3 + $0x20] sm:$0xf]
    %v1543 = vld [vmem:[%s3 + $0x24] sm:$0xf]
    %v1544 = vld [vmem:[%s3 + $0x28] sm:$0xf]
    %v1545 = vld [vmem:[%s3 + $0x2c] sm:$0xf]
    %v1546 = vld [vmem:[%s3 + $0x30] sm:$0xf]
    %v1547 = vld [vmem:[%s3 + $0x34] sm:$0xf]
    %v1548 = vld [vmem:[%s3 + $0x38] sm:$0xf]
    %v1549 = vld [vmem:[%s3 + $0x3c] sm:$0xf]
    %v1550 = vld [vmem:[%s3 + $0x40] sm:$0xf]
    %v1551 = vld [vmem:[%s3 + $0x44] sm:$0xf]
    %v1552 = vld [vmem:[%s3 + $0x48] sm:$0xf]
    %v1553 = vld [vmem:[%s3 + $0x4c] sm:$0xf]
    %v1554 = vld [vmem:[%s3 + $0x50] sm:$0xf]
    %v1555 = vld [vmem:[%s3 + $0x54] sm:$0xf]
    %v1556 = vld [vmem:[%s3 + $0x58] sm:$0xf]
    %v1557 = vld [vmem:[%s3 + $0x5c] sm:$0xf]
    %v1558 = vld [vmem:[%s3 + $0x60] sm:$0xf]
    %v1559 = vld [vmem:[%s3 + $0x64] sm:$0xf]
    %v1560 = vld [vmem:[%s3 + $0x68] sm:$0xf]
    %v1561 = vld [vmem:[%s3 + $0x6c] sm:$0xf]
    %v1562 = vld [vmem:[%s3 + $0x70] sm:$0xf]
    %v1563 = vld [vmem:[%s3 + $0x74] sm:$0xf]
    %v1564 = vld [vmem:[%s3 + $0x78] sm:$0xf]
    %v1565 = vld [vmem:[%s3 + $0x7c] sm:$0xf]
    %v1566 = vld [vmem:[%s3 + $0x80] sm:$0xf]
    %v1567 = vld [vmem:[%s3 + $0x84] sm:$0xf]
    %v1568 = vld [vmem:[%s3 + $0x88] sm:$0xf]
    %v1569 = vld [vmem:[%s3 + $0x8c] sm:$0xf]
    %v1570 = vld [vmem:[%s3 + $0x90] sm:$0xf]
    %v1571 = vld [vmem:[%s3 + $0x94] sm:$0xf]
    %v1572 = vld [vmem:[%s3 + $0x98] sm:$0xf]
    %v1573 = vld [vmem:[%s3 + $0x9c] sm:$0xf]
    %v1574 = vld [vmem:[%s3 + $0xa0] sm:$0xf]
    %v1575 = vld [vmem:[%s3 + $0xa4] sm:$0xf]
    %v1576 = vld [vmem:[%s3 + $0xa8] sm:$0xf]
    %v1577 = vld [vmem:[%s3 + $0xac] sm:$0xf]
    %v1578 = vld [vmem:[%s3 + $0xb0] sm:$0xf]
    %v1579 = vld [vmem:[%s3 + $0xb4] sm:$0xf]
    %v1580 = vld [vmem:[%s3 + $0xb8] sm:$0xf]
    %v1581 = vld [vmem:[%s3 + $0xbc] sm:$0xf]
    %v1582 = vld [vmem:[%s5 + $0x140] sm:$0xf]
    %v1583 = vld [vmem:[%s5 + $0x144] sm:$0xf]
    %v1584 = vld [vmem:[%s5 + $0x148] sm:$0xf]
    %v1585 = vld [vmem:[%s5 + $0x14c] sm:$0xf]
    %v1586 = vld [vmem:[%s5 + $0x150] sm:$0xf]
    %v1587 = vld [vmem:[%s5 + $0x154] sm:$0xf]
    %v1588 = vld [vmem:[%s5 + $0x158] sm:$0xf]
    %v1589 = vld [vmem:[%s5 + $0x15c] sm:$0xf]
    %v1590 = vld [vmem:[%s5 + $0x160] sm:$0xf]
    %v1591 = vld [vmem:[%s5 + $0x164] sm:$0xf]
    %v1592 = vld [vmem:[%s5 + $0x168] sm:$0xf]
    %v1593 = vld [vmem:[%s5 + $0x16c] sm:$0xf]
    %v1594 = vld [vmem:[%s5 + $0x170] sm:$0xf]
    %v1595 = vld [vmem:[%s5 + $0x174] sm:$0xf]
    %v1596 = vld [vmem:[%s5 + $0x178] sm:$0xf]
    %v1597 = vld [vmem:[%s5 + $0x17c] sm:$0xf]
    %v1598 = vld [vmem:[#allocation11 + $0x14] sm:$0xf]
    %v1599 = vld [vmem:[#allocation11 + $0x2c] sm:$0xf]
    %v1600 = vld [vmem:[#allocation11 + $0x44] sm:$0xf]
    %v1601 = vld [vmem:[#allocation11 + $0x5c] sm:$0xf]
    %v1602 = vld [vmem:[%s7 + $0x4] ss:$0 sm:$0xff]
    %v1603 = vld [vmem:[%s7 + $0x5] ss:$0 sm:$0xff]
    %v1604 = vpack.c.bf16 %v1531, %v1531
    %v1605 = vpack.c.bf16 %v1532, %v1532
    %v1606 = vpack.c.bf16 %v1533, %v1533
    %v1655 = vunpack.c.l.b16 %v1534
    %v1656 = vunpack.c.l.b16 %v1535
    %v1657 = vunpack.c.l.b16 %v1536
    %v1658 = vunpack.c.l.b16 %v1537
    %v1659 = vunpack.c.l.b16 %v1538
    %v1660 = vunpack.c.l.b16 %v1539
    %v1661 = vunpack.c.l.b16 %v1540
    %v1662 = vunpack.c.l.b16 %v1541
    %v1663 = vunpack.c.l.b16 %v1542
    %v1664 = vunpack.c.l.b16 %v1543
    %v1665 = vunpack.c.l.b16 %v1544
    %v1666 = vunpack.c.l.b16 %v1545
    %v1667 = vunpack.c.l.b16 %v1546
    %v1668 = vunpack.c.l.b16 %v1547
    %v1669 = vunpack.c.l.b16 %v1548
    %v1670 = vunpack.c.l.b16 %v1549
    %v1671 = vunpack.c.l.b16 %v1550
    %v1672 = vunpack.c.l.b16 %v1551
    %v1673 = vunpack.c.l.b16 %v1552
    %v1674 = vunpack.c.l.b16 %v1553
    %v1675 = vunpack.c.l.b16 %v1554
    %v1676 = vunpack.c.l.b16 %v1555
    %v1677 = vunpack.c.l.b16 %v1556
    %v1678 = vunpack.c.l.b16 %v1557
    %v1679 = vunpack.c.l.b16 %v1558
    %v1680 = vunpack.c.l.b16 %v1559
    %v1681 = vunpack.c.l.b16 %v1560
    %v1682 = vunpack.c.l.b16 %v1561
    %v1683 = vunpack.c.l.b16 %v1562
    %v1684 = vunpack.c.l.b16 %v1563
    %v1685 = vunpack.c.l.b16 %v1564
    %v1686 = vunpack.c.l.b16 %v1565
    %v1687 = vunpack.c.l.b16 %v1566
    %v1688 = vunpack.c.l.b16 %v1567
    %v1689 = vunpack.c.l.b16 %v1568
    %v1690 = vunpack.c.l.b16 %v1569
    %v1691 = vunpack.c.l.b16 %v1570
    %v1692 = vunpack.c.l.b16 %v1571
    %v1693 = vunpack.c.l.b16 %v1572
    %v1694 = vunpack.c.l.b16 %v1573
    %v1695 = vunpack.c.l.b16 %v1574
    %v1696 = vunpack.c.l.b16 %v1575
    %v1697 = vunpack.c.l.b16 %v1576
    %v1698 = vunpack.c.l.b16 %v1577
    %v1699 = vunpack.c.l.b16 %v1578
    %v1700 = vunpack.c.l.b16 %v1579
    %v1701 = vunpack.c.l.b16 %v1580
    %v1702 = vunpack.c.l.b16 %v1581
    %v1703 = vpack.c.b16 %v1656, %v1655
    %v1704 = vpack.c.b16 %v1658, %v1657
    %v1705 = vpack.c.b16 %v1660, %v1659
    %v1706 = vpack.c.b16 %v1662, %v1661
    %v1707 = vpack.c.b16 %v1664, %v1663
    %v1708 = vpack.c.b16 %v1666, %v1665
    %v1709 = vpack.c.b16 %v1668, %v1667
    %v1710 = vpack.c.b16 %v1670, %v1669
    %v1711 = vpack.c.b16 %v1672, %v1671
    %v1712 = vpack.c.b16 %v1674, %v1673
    %v1713 = vpack.c.b16 %v1676, %v1675
    %v1714 = vpack.c.b16 %v1678, %v1677
    %v1715 = vpack.c.b16 %v1680, %v1679
    %v1716 = vpack.c.b16 %v1682, %v1681
    %v1717 = vpack.c.b16 %v1684, %v1683
    %v1718 = vpack.c.b16 %v1686, %v1685
    %v1719 = vpack.c.b16 %v1688, %v1687
    %v1720 = vpack.c.b16 %v1690, %v1689
    %v1721 = vpack.c.b16 %v1692, %v1691
    %v1722 = vpack.c.b16 %v1694, %v1693
    %v1723 = vpack.c.b16 %v1696, %v1695
    %v1724 = vpack.c.b16 %v1698, %v1697
    %v1725 = vpack.c.b16 %v1700, %v1699
    %v1726 = vpack.c.b16 %v1702, %v1701
    %1751 = vmatprep.subr.bf16.mxu0 0
    %1752 = vmatpush1.bf16.msra.mxu0 %v1710
    %1753 = vmatprep.subr.bf16.mxu0 0
    %1754 = vmatpush1.bf16.msra.mxu0 %v1709
    %1755 = vmatprep.subr.bf16.mxu0 0
    %1756 = vmatpush1.bf16.msra.mxu0 %v1708
    %1757 = vmatprep.subr.bf16.mxu0 0
    %1758 = vmatpush1.bf16.msra.mxu0 %v1707
    %1759 = vmatprep.subr.bf16.mxu0 0
    %1760 = vmatpush1.bf16.msra.mxu0 %v1706
    %1761 = vmatprep.subr.bf16.mxu0 0
    %1762 = vmatpush1.bf16.msra.mxu0 %v1705
    %1763 = vmatprep.subr.bf16.mxu0 0
    %1764 = vmatpush1.bf16.msra.mxu0 %v1704
    %1765 = vmatprep.subr.bf16.mxu0 0
    %1766 = vmatpush1.bf16.msra.mxu0 %v1703
    %1767 = vmatprep.subr.bf16.mxu0 0
    %1768 = vmatpush2.bf16.msra.mxu0 %v1718
    %1769 = vmatprep.subr.bf16.mxu0 0
    %1770 = vmatpush2.bf16.msra.mxu0 %v1717
    %1771 = vmatprep.subr.bf16.mxu0 0
    %1772 = vmatpush2.bf16.msra.mxu0 %v1716
    %1773 = vmatprep.subr.bf16.mxu0 0
    %1774 = vmatpush2.bf16.msra.mxu0 %v1715
    %1775 = vmatprep.subr.bf16.mxu0 0
    %1776 = vmatpush2.bf16.msra.mxu0 %v1714
    %1777 = vmatprep.subr.bf16.mxu0 0
    %1778 = vmatpush2.bf16.msra.mxu0 %v1713
    %1779 = vmatprep.subr.bf16.mxu0 0
    %1780 = vmatpush2.bf16.msra.mxu0 %v1712
    %1781 = vmatprep.subr.bf16.mxu0 0
    %1782 = vmatpush2.bf16.msra.mxu0 %v1711
    %1783 = vmatprep.mubr.bf16.mxu0 %v1605
    %1784 = vmatmul.mubr.bf16.gmra.mxu0 %v1604
    %v1785 = vpop.f32.mrf.mxu0
    %v1786 = vadd.f32 0.0, %v1785
    %v1787 = vpop.f32.mrf.mxu0
    %v1788 = vpop.f32.mrf.mxu0
    %v1789 = vpop.f32.mrf.mxu0
    %1790 = vdwg.mxu0
    %1791 = vmatprep.subr.bf16.mxu0 0
    %1792 = vmatpush1.bf16.msra.mxu0 %v1726
    %1793 = vmatprep.subr.bf16.mxu0 0
    %1794 = vmatpush1.bf16.msra.mxu0 %v1725
    %1795 = vmatprep.subr.bf16.mxu0 0
    %1796 = vmatpush1.bf16.msra.mxu0 %v1724
    %1797 = vmatprep.subr.bf16.mxu0 0
    %1798 = vmatpush1.bf16.msra.mxu0 %v1723
    %1799 = vmatprep.subr.bf16.mxu0 0
    %1800 = vmatpush1.bf16.msra.mxu0 %v1722
    %1801 = vmatprep.subr.bf16.mxu0 0
    %1802 = vmatpush1.bf16.msra.mxu0 %v1721
    %1803 = vmatprep.subr.bf16.mxu0 0
    %1804 = vmatpush1.bf16.msra.mxu0 %v1720
    %1805 = vmatprep.subr.bf16.mxu0 0
    %1806 = vmatpush1.bf16.msra.mxu0 %v1719
    %1807 = vmatprep.subr.bf16.mxu0 0
    %1808 = vmatpush2.bf16.msra.mxu0 0
    %1809 = vmatprep.subr.bf16.mxu0 0
    %1810 = vmatpush2.bf16.msra.mxu0 0
    %1811 = vmatprep.subr.bf16.mxu0 0
    %1812 = vmatpush2.bf16.msra.mxu0 0
    %1813 = vmatprep.subr.bf16.mxu0 0
    %1814 = vmatpush2.bf16.msra.mxu0 0
    %1815 = vmatprep.subr.bf16.mxu0 0
    %1816 = vmatpush2.bf16.msra.mxu0 0
    %1817 = vmatprep.subr.bf16.mxu0 0
    %1818 = vmatpush2.bf16.msra.mxu0 0
    %1819 = vmatprep.subr.bf16.mxu0 0
    %1820 = vmatpush2.bf16.msra.mxu0 0
    %1821 = vmatprep.subr.bf16.mxu0 0
    %1822 = vmatpush2.bf16.msra.mxu0 0
    %1823 = vmatprep.mubr.bf16.mxu0 0
    %1824 = vmatmul.mubr.bf16.gmra.mxu0 %v1606
    %v1825 = vpop.f32.mrf.mxu0
    %v1826 = vadd.f32 %v1786, %v1825
    %v1827 = vpop.f32.mrf.mxu0
    %v1828 = vpop.f32.mrf.mxu0
    %v1829 = vpop.f32.mrf.mxu0
    %1830 = vdwg.mxu0
    %v1831 = vrot.slane %v1826, 4
    %v1832 = vadd.f32 %v1826, %v1831
    %v1833 = vrot.slane %v1832, 2
    %v1834 = vadd.f32 %v1832, %v1833
    %v1835 = vrot.slane %v1834, 1
    %v1836 = vadd.f32 %v1834, %v1835
    %v1837 = vmul.f32 %v1826, %v1826
    %v1838 = vrot.slane %v1837, 4
    %v1839 = vadd.f32 %v1837, %v1838
    %v1840 = vrot.slane %v1839, 2
    %v1841 = vadd.f32 %v1839, %v1840
    %v1842 = vrot.slane %v1841, 1
    %v1843 = vadd.f32 %v1841, %v1842
    %v1844 = vsel %vm325, %v1836, %v1843
    %v1845 = vunpack.c.l.bf16 %v1582
    %v1846 = vunpack.c.l.bf16 %v1583
    %v1847 = vunpack.c.l.bf16 %v1584
    %v1848 = vunpack.c.l.bf16 %v1585
    %v1849 = vunpack.c.l.bf16 %v1586
    %v1850 = vunpack.c.l.bf16 %v1587
    %v1851 = vunpack.c.l.bf16 %v1588
    %v1852 = vunpack.c.l.bf16 %v1589
    %v1853 = vunpack.c.l.bf16 %v1590
    %v1854 = vunpack.c.l.bf16 %v1591
    %v1855 = vunpack.c.l.bf16 %v1592
    %v1856 = vunpack.c.l.bf16 %v1593
    %v1857 = vunpack.c.l.bf16 %v1594
    %v1858 = vunpack.c.l.bf16 %v1595
    %v1859 = vunpack.c.l.bf16 %v1596
    %v1860 = vunpack.c.l.bf16 %v1597
    %1861 = vmatprep.subr.mxu0 0.0
    %1862 = vmatpush1.msra.mxu0 %v1860
    %1863 = vmatprep.subr.mxu0 0.0
    %1864 = vmatpush1.msra.mxu0 %v1859
    %1865 = vmatprep.subr.mxu0 0.0
    %1866 = vmatpush1.msra.mxu0 %v1858
    %1867 = vmatprep.subr.mxu0 0.0
    %1868 = vmatpush1.msra.mxu0 %v1857
    %1869 = vmatprep.subr.mxu0 0.0
    %1870 = vmatpush1.msra.mxu0 %v1856
    %1871 = vmatprep.subr.mxu0 0.0
    %1872 = vmatpush1.msra.mxu0 %v1855
    %1873 = vmatprep.subr.mxu0 0.0
    %1874 = vmatpush1.msra.mxu0 %v1854
    %1875 = vmatprep.subr.mxu0 0.0
    %1876 = vmatpush1.msra.mxu0 %v1853
    %1877 = vmatprep.subr.mxu0 0.0
    %1878 = vmatpush1.msra.mxu0 %v1852
    %1879 = vmatprep.subr.mxu0 0.0
    %1880 = vmatpush1.msra.mxu0 %v1851
    %1881 = vmatprep.subr.mxu0 0.0
    %1882 = vmatpush1.msra.mxu0 %v1850
    %1883 = vmatprep.subr.mxu0 0.0
    %1884 = vmatpush1.msra.mxu0 %v1849
    %1885 = vmatprep.subr.mxu0 0.0
    %1886 = vmatpush1.msra.mxu0 %v1848
    %1887 = vmatprep.subr.mxu0 0.0
    %1888 = vmatpush1.msra.mxu0 %v1847
    %1889 = vmatprep.subr.mxu0 0.0
    %1890 = vmatpush1.msra.mxu0 %v1846
    %1891 = vmatprep.subr.mxu0 0.0
    %1892 = vmatpush1.msra.mxu0 %v1845
    %1893 = vmatprep.subr.mxu0 0.0
    %1894 = vmatpush2.msra.mxu0 0.0
    %1895 = vmatprep.subr.mxu0 0.0
    %1896 = vmatpush2.msra.mxu0 0.0
    %1897 = vmatprep.subr.mxu0 0.0
    %1898 = vmatpush2.msra.mxu0 0.0
    %1899 = vmatprep.subr.mxu0 0.0
    %1900 = vmatpush2.msra.mxu0 0.0
    %1901 = vmatprep.subr.mxu0 0.0
    %1902 = vmatpush2.msra.mxu0 0.0
    %1903 = vmatprep.subr.mxu0 0.0
    %1904 = vmatpush2.msra.mxu0 0.0
    %1905 = vmatprep.subr.mxu0 0.0
    %1906 = vmatpush2.msra.mxu0 0.0
    %1907 = vmatprep.subr.mxu0 0.0
    %1908 = vmatpush2.msra.mxu0 0.0
    %1909 = vmatprep.subr.mxu0 0.0
    %1910 = vmatpush2.msra.mxu0 0.0
    %1911 = vmatprep.subr.mxu0 0.0
    %1912 = vmatpush2.msra.mxu0 0.0
    %1913 = vmatprep.subr.mxu0 0.0
    %1914 = vmatpush2.msra.mxu0 0.0
    %1915 = vmatprep.subr.mxu0 0.0
    %1916 = vmatpush2.msra.mxu0 0.0
    %1917 = vmatprep.subr.mxu0 0.0
    %1918 = vmatpush2.msra.mxu0 0.0
    %1919 = vmatprep.subr.mxu0 0.0
    %1920 = vmatpush2.msra.mxu0 0.0
    %1921 = vmatprep.subr.mxu0 0.0
    %1922 = vmatpush2.msra.mxu0 0.0
    %1923 = vmatprep.subr.mxu0 0.0
    %1924 = vmatpush2.msra.mxu0 0.0
    %1925 = vmatprep.mubr.f32.mxu0 0.0
    %1926 = vmatmul.mubr.f32.gmra.mxu0 %v1844
    %v1927 = vpop.f32.mrf.mxu0
    %v1928 = vadd.f32 0.0, %v1927
    %v1929 = vpop.f32.mrf.mxu0
    %1930 = vdwg.mxu0
    %s1931 = smul.f32 %s114, 0.25
    %v1932 = vstv %s1931
    %v1933 = vmul.f32 %v1928, %v1932
    %v1934 = vunpack.c.l.bf16 %v1598
    %v1935 = vunpack.c.l.bf16 %v1599
    %v1936 = vunpack.c.l.bf16 %v1600
    %v1937 = vunpack.c.l.bf16 %v1601
    %v1939 = vsel %vm441, %v1933, 0
    %1941 = vmatprep.subr.mxu0 0.0
    %1942 = vmatpush1.msra.mxu0 0.0
    %1943 = vmatprep.subr.mxu0 0.0
    %1944 = vmatpush1.msra.mxu0 0.0
    %1945 = vmatprep.subr.mxu0 0.0
    %1946 = vmatpush1.msra.mxu0 0.0
    %1947 = vmatprep.subr.mxu0 0.0
    %1948 = vmatpush1.msra.mxu0 0.0
    %1949 = vmatprep.subr.mxu0 0.0
    %1950 = vmatpush1.msra.mxu0 0.0
    %1951 = vmatprep.subr.mxu0 0.0
    %1952 = vmatpush1.msra.mxu0 0.0
    %1953 = vmatprep.subr.mxu0 0.0
    %1954 = vmatpush1.msra.mxu0 0.0
    %1955 = vmatprep.subr.mxu0 0.0
    %1956 = vmatpush1.msra.mxu0 0.0
    %1957 = vmatprep.subr.mxu0 0.0
    %1958 = vmatpush1.msra.mxu0 0.0
    %1959 = vmatprep.subr.mxu0 0.0
    %1960 = vmatpush1.msra.mxu0 0.0
    %1961 = vmatprep.subr.mxu0 0.0
    %1962 = vmatpush1.msra.mxu0 0.0
    %1963 = vmatprep.subr.mxu0 0.0
    %1964 = vmatpush1.msra.mxu0 0.0
    %1965 = vmatprep.subr.mxu0 0.0
    %1966 = vmatpush1.msra.mxu0 %v1937
    %1967 = vmatprep.subr.mxu0 0.0
    %1968 = vmatpush1.msra.mxu0 %v1936
    %1969 = vmatprep.subr.mxu0 0.0
    %1970 = vmatpush1.msra.mxu0 %v1935
    %1971 = vmatprep.subr.mxu0 0.0
    %1972 = vmatpush1.msra.mxu0 %v1934
    %1973 = vmatprep.subr.mxu0 0.0
    %1974 = vmatpush2.msra.mxu0 0.0
    %1975 = vmatprep.subr.mxu0 0.0
    %1976 = vmatpush2.msra.mxu0 0.0
    %1977 = vmatprep.subr.mxu0 0.0
    %1978 = vmatpush2.msra.mxu0 0.0
    %1979 = vmatprep.subr.mxu0 0.0
    %1980 = vmatpush2.msra.mxu0 0.0
    %1981 = vmatprep.subr.mxu0 0.0
    %1982 = vmatpush2.msra.mxu0 0.0
    %1983 = vmatprep.subr.mxu0 0.0
    %1984 = vmatpush2.msra.mxu0 0.0
    %1985 = vmatprep.subr.mxu0 0.0
    %1986 = vmatpush2.msra.mxu0 0.0
    %1987 = vmatprep.subr.mxu0 0.0
    %1988 = vmatpush2.msra.mxu0 0.0
    %1989 = vmatprep.subr.mxu0 0.0
    %1990 = vmatpush2.msra.mxu0 0.0
    %1991 = vmatprep.subr.mxu0 0.0
    %1992 = vmatpush2.msra.mxu0 0.0
    %1993 = vmatprep.subr.mxu0 0.0
    %1994 = vmatpush2.msra.mxu0 0.0
    %1995 = vmatprep.subr.mxu0 0.0
    %1996 = vmatpush2.msra.mxu0 0.0
    %1997 = vmatprep.subr.mxu0 0.0
    %1998 = vmatpush2.msra.mxu0 0.0
    %1999 = vmatprep.subr.mxu0 0.0
    %2000 = vmatpush2.msra.mxu0 0.0
    %2001 = vmatprep.subr.mxu0 0.0
    %2002 = vmatpush2.msra.mxu0 0.0
    %2003 = vmatprep.subr.mxu0 0.0
    %2004 = vmatpush2.msra.mxu0 0.0
    %2005 = vmatprep.mubr.f32.mxu0 0.0
    %2006 = vmatmul.mubr.f32.gmra.mxu0 %v1939
    %v2007 = vpop.f32.mrf.mxu0
    %v2008 = vadd.f32 0.0, %v2007
    %v2009 = vpop.f32.mrf.mxu0
    %2010 = vdwg.mxu0
    %v2011 = vmul.f32 %v2008, %v2008
    %v2013 = vrot.slane %v2011, 7
    %v2015 = vsub.f32 %v2008, %v2013
    %v2016 = vmax.f32 %v2015, 0.0
    %v2017 = vlaneseq
    %v2018 = vshrl.u32 %v2017, 7
    %v2019 = vsub.s32 0, %v2018
    %v2020 = vrot.slane %v2008, %v2019
    %v2021 = vsub.f32 %v1826, %v2020
    %v2022 = vadd.f32 %v2016, 1e-05
    %v2023 = vrsqrt.pop %v2022
    %v2024 = vlaneseq
    %v2025 = vshrl.u32 %v2024, 7
    %v2026 = vsub.s32 1, %v2025
    %v2027 = vrot.slane %v2023, %v2026
    %v2028 = vmul.f32 %v2021, %v2027
    %v2029 = vmul.f32 %v2028, %v1602
    %v2030 = vadd.f32 %v2029, %v1603
    %v2031 = vmax.f32 %v2030, 0.0
    %v2032 = vsel %vm581, %v2031, 0.0
    %v2033 = vpack.c.bf16 %v2032, %v2032
    %v2034 = vld [vmem:[#allocation9] sm:$0xff]
    %v2035 = vld [vmem:[#allocation9 + $0x8] sm:$0xff]
    %v2036 = vld [vmem:[#allocation9 + $0x10] sm:$0xff]
    %v2037 = vld [vmem:[#allocation9 + $0x18] sm:$0xff]
    %v2038 = vld [vmem:[#allocation9 + $0x20] sm:$0xff]
    %v2039 = vld [vmem:[#allocation9 + $0x28] sm:$0xff]
    %v2040 = vld [vmem:[#allocation9 + $0x30] sm:$0xff]
    %v2041 = vld [vmem:[#allocation9 + $0x38] sm:$0xff]
    %v2042 = vld [vmem:[#allocation9 + $0x40] sm:$0xff]
    %v2043 = vld [vmem:[#allocation9 + $0x48] sm:$0xff]
    %v2044 = vld [vmem:[#allocation9 + $0x50] sm:$0xff]
    %v2045 = vld [vmem:[#allocation9 + $0x58] sm:$0xff]
    %v2046 = vld [vmem:[#allocation9 + $0x60] sm:$0xff]
    %v2047 = vld [vmem:[#allocation9 + $0x68] sm:$0xff]
    %v2048 = vld [vmem:[#allocation9 + $0x70] sm:$0xff]
    %v2049 = vld [vmem:[#allocation9 + $0x78] sm:$0xff]
    %v2050 = vld [vmem:[#allocation9 + $0x80] sm:$0xff]
    %v2051 = vld [vmem:[#allocation9 + $0x88] sm:$0xff]
    %v2052 = vld [vmem:[#allocation9 + $0x90] sm:$0xff]
    %v2053 = vld [vmem:[#allocation9 + $0x98] sm:$0xff]
    %v2054 = vld [vmem:[#allocation9 + $0xa0] sm:$0xff]
    %v2055 = vld [vmem:[#allocation9 + $0xa8] sm:$0xff]
    %v2056 = vld [vmem:[#allocation9 + $0xb0] sm:$0xff]
    %v2057 = vld [vmem:[#allocation9 + $0xb8] sm:$0xff]
    %v2058 = vld [vmem:[#allocation9 + $0xc0] sm:$0xff]
    %v2059 = vld [vmem:[#allocation9 + $0xc8] sm:$0xff]
    %v2060 = vld [vmem:[#allocation9 + $0xd0] sm:$0xff]
    %v2061 = vld [vmem:[#allocation9 + $0xd8] sm:$0xff]
    %v2062 = vld [vmem:[#allocation9 + $0xe0] sm:$0xff]
    %v2063 = vld [vmem:[#allocation9 + $0xe8] sm:$0xff]
    %v2064 = vld [vmem:[#allocation9 + $0xf0] sm:$0xff]
    %v2065 = vld [vmem:[#allocation9 + $0xf8] sm:$0xff]
    %s2066 = scalar_lea.vmem %s7, 6
    %v2067 = vld [vmem:[%s2066] ss:$8 sm:$0xf]
    %v2069 = vlaneseq
    %v2070 = vshrl.u32 %v2069, 7
    %v2071 = vsub.s32 0, %v2070
    %v2072 = vrot.slane %v2067, %v2071
    %v2073 = vlaneseq
    %v2074 = vshrl.u32 %v2073, 7
    %v2075 = vsub.s32 1, %v2074
    %v2076 = vrot.slane %v2067, %v2075
    %v2077 = vlaneseq
    %v2078 = vshrl.u32 %v2077, 7
    %v2079 = vsub.s32 2, %v2078
    %v2080 = vrot.slane %v2067, %v2079
    %v2081 = vlaneseq
    %v2082 = vshrl.u32 %v2081, 7
    %v2083 = vsub.s32 3, %v2082
    %v2084 = vrot.slane %v2067, %v2083
    %v2121 = vunpack.c.l.b16 %v2034
    %v2122 = vunpack.c.h.b16 %v2034
    %v2123 = vunpack.c.l.b16 %v2035
    %v2124 = vunpack.c.h.b16 %v2035
    %v2125 = vunpack.c.l.b16 %v2036
    %v2126 = vunpack.c.h.b16 %v2036
    %v2127 = vunpack.c.l.b16 %v2037
    %v2128 = vunpack.c.h.b16 %v2037
    %v2129 = vunpack.c.l.b16 %v2038
    %v2130 = vunpack.c.h.b16 %v2038
    %v2131 = vunpack.c.l.b16 %v2039
    %v2132 = vunpack.c.h.b16 %v2039
    %v2133 = vunpack.c.l.b16 %v2040
    %v2134 = vunpack.c.h.b16 %v2040
    %v2135 = vunpack.c.l.b16 %v2041
    %v2136 = vunpack.c.h.b16 %v2041
    %v2137 = vunpack.c.l.b16 %v2042
    %v2138 = vunpack.c.h.b16 %v2042
    %v2139 = vunpack.c.l.b16 %v2043
    %v2140 = vunpack.c.h.b16 %v2043
    %v2141 = vunpack.c.l.b16 %v2044
    %v2142 = vunpack.c.h.b16 %v2044
    %v2143 = vunpack.c.l.b16 %v2045
    %v2144 = vunpack.c.h.b16 %v2045
    %v2145 = vunpack.c.l.b16 %v2046
    %v2146 = vunpack.c.h.b16 %v2046
    %v2147 = vunpack.c.l.b16 %v2047
    %v2148 = vunpack.c.h.b16 %v2047
    %v2149 = vunpack.c.l.b16 %v2048
    %v2150 = vunpack.c.h.b16 %v2048
    %v2151 = vunpack.c.l.b16 %v2049
    %v2152 = vunpack.c.h.b16 %v2049
    %v2153 = vunpack.c.l.b16 %v2050
    %v2154 = vunpack.c.h.b16 %v2050
    %v2155 = vunpack.c.l.b16 %v2051
    %v2156 = vunpack.c.h.b16 %v2051
    %v2157 = vunpack.c.l.b16 %v2052
    %v2158 = vunpack.c.h.b16 %v2052
    %v2159 = vunpack.c.l.b16 %v2053
    %v2160 = vunpack.c.h.b16 %v2053
    %v2161 = vunpack.c.l.b16 %v2054
    %v2162 = vunpack.c.h.b16 %v2054
    %v2163 = vunpack.c.l.b16 %v2055
    %v2164 = vunpack.c.h.b16 %v2055
    %v2165 = vunpack.c.l.b16 %v2056
    %v2166 = vunpack.c.h.b16 %v2056
    %v2167 = vunpack.c.l.b16 %v2057
    %v2168 = vunpack.c.h.b16 %v2057
    %v2169 = vunpack.c.l.b16 %v2058
    %v2170 = vunpack.c.h.b16 %v2058
    %v2171 = vunpack.c.l.b16 %v2059
    %v2172 = vunpack.c.h.b16 %v2059
    %v2173 = vunpack.c.l.b16 %v2060
    %v2174 = vunpack.c.h.b16 %v2060
    %v2175 = vunpack.c.l.b16 %v2061
    %v2176 = vunpack.c.h.b16 %v2061
    %v2177 = vunpack.c.l.b16 %v2062
    %v2178 = vunpack.c.h.b16 %v2062
    %v2179 = vunpack.c.l.b16 %v2063
    %v2180 = vunpack.c.h.b16 %v2063
    %v2181 = vunpack.c.l.b16 %v2064
    %v2182 = vunpack.c.h.b16 %v2064
    %v2183 = vunpack.c.l.b16 %v2065
    %v2184 = vunpack.c.h.b16 %v2065
    %v2185 = vpack.c.b16 %v2125, %v2121
    %v2186 = vpack.c.b16 %v2126, %v2122
    %v2187 = vpack.c.b16 %v2127, %v2123
    %v2188 = vpack.c.b16 %v2128, %v2124
    %v2189 = vpack.c.b16 %v2133, %v2129
    %v2190 = vpack.c.b16 %v2134, %v2130
    %v2191 = vpack.c.b16 %v2135, %v2131
    %v2192 = vpack.c.b16 %v2136, %v2132
    %v2193 = vpack.c.b16 %v2141, %v2137
    %v2194 = vpack.c.b16 %v2142, %v2138
    %v2195 = vpack.c.b16 %v2143, %v2139
    %v2196 = vpack.c.b16 %v2144, %v2140
    %v2197 = vpack.c.b16 %v2149, %v2145
    %v2198 = vpack.c.b16 %v2150, %v2146
    %v2199 = vpack.c.b16 %v2151, %v2147
    %v2200 = vpack.c.b16 %v2152, %v2148
    %v2201 = vpack.c.b16 %v2157, %v2153
    %v2202 = vpack.c.b16 %v2158, %v2154
    %v2203 = vpack.c.b16 %v2159, %v2155
    %v2204 = vpack.c.b16 %v2160, %v2156
    %v2205 = vpack.c.b16 %v2165, %v2161
    %v2206 = vpack.c.b16 %v2166, %v2162
    %v2207 = vpack.c.b16 %v2167, %v2163
    %v2208 = vpack.c.b16 %v2168, %v2164
    %v2209 = vpack.c.b16 %v2173, %v2169
    %v2210 = vpack.c.b16 %v2174, %v2170
    %v2211 = vpack.c.b16 %v2175, %v2171
    %v2212 = vpack.c.b16 %v2176, %v2172
    %v2213 = vpack.c.b16 %v2181, %v2177
    %v2214 = vpack.c.b16 %v2182, %v2178
    %v2215 = vpack.c.b16 %v2183, %v2179
    %v2216 = vpack.c.b16 %v2184, %v2180
    %2249 = vmatprep.subr.bf16.mxu0 %v2214
    %2250 = vmatpush1.bf16.msra.mxu0 %v2213
    %2251 = vmatprep.subr.bf16.mxu0 %v2210
    %2252 = vmatpush1.bf16.msra.mxu0 %v2209
    %2253 = vmatprep.subr.bf16.mxu0 %v2206
    %2254 = vmatpush1.bf16.msra.mxu0 %v2205
    %2255 = vmatprep.subr.bf16.mxu0 %v2202
    %2256 = vmatpush1.bf16.msra.mxu0 %v2201
    %2257 = vmatprep.subr.bf16.mxu0 %v2198
    %2258 = vmatpush1.bf16.msra.mxu0 %v2197
    %2259 = vmatprep.subr.bf16.mxu0 %v2194
    %2260 = vmatpush1.bf16.msra.mxu0 %v2193
    %2261 = vmatprep.subr.bf16.mxu0 %v2190
    %2262 = vmatpush1.bf16.msra.mxu0 %v2189
    %2263 = vmatprep.subr.bf16.mxu0 %v2186
    %2264 = vmatpush1.bf16.msra.mxu0 %v2185
    %2265 = vmatprep.subr.bf16.mxu0 0
    %2266 = vmatpush2.bf16.msra.mxu0 0
    %2267 = vmatprep.subr.bf16.mxu0 0
    %2268 = vmatpush2.bf16.msra.mxu0 0
    %2269 = vmatprep.subr.bf16.mxu0 0
    %2270 = vmatpush2.bf16.msra.mxu0 0
    %2271 = vmatprep.subr.bf16.mxu0 0
    %2272 = vmatpush2.bf16.msra.mxu0 0
    %2273 = vmatprep.subr.bf16.mxu0 0
    %2274 = vmatpush2.bf16.msra.mxu0 0
    %2275 = vmatprep.subr.bf16.mxu0 0
    %2276 = vmatpush2.bf16.msra.mxu0 0
    %2277 = vmatprep.subr.bf16.mxu0 0
    %2278 = vmatpush2.bf16.msra.mxu0 0
    %2279 = vmatprep.subr.bf16.mxu0 0
    %2280 = vmatpush2.bf16.msra.mxu0 0
    %2281 = vmatprep.mubr.bf16.mxu0 0
    %2282 = vmatmul.mubr.bf16.gmra.mxu0 %v2033
    %v2283 = vpop.f32.mrf.mxu0
    %v2284 = vadd.f32 %v2072, %v2283
    %v2285 = vpop.f32.mrf.mxu0
    %v2286 = vadd.f32 %v2076, %v2285
    %v2287 = vpop.f32.mrf.mxu0
    %v2288 = vpop.f32.mrf.mxu0
    %2289 = vdwg.mxu0
    %2290 = vmatprep.subr.bf16.mxu0 %v2216
    %2291 = vmatpush1.bf16.msra.mxu0 %v2215
    %2292 = vmatprep.subr.bf16.mxu0 %v2212
    %2293 = vmatpush1.bf16.msra.mxu0 %v2211
    %2294 = vmatprep.subr.bf16.mxu0 %v2208
    %2295 = vmatpush1.bf16.msra.mxu0 %v2207
    %2296 = vmatprep.subr.bf16.mxu0 %v2204
    %2297 = vmatpush1.bf16.msra.mxu0 %v2203
    %2298 = vmatprep.subr.bf16.mxu0 %v2200
    %2299 = vmatpush1.bf16.msra.mxu0 %v2199
    %2300 = vmatprep.subr.bf16.mxu0 %v2196
    %2301 = vmatpush1.bf16.msra.mxu0 %v2195
    %2302 = vmatprep.subr.bf16.mxu0 %v2192
    %2303 = vmatpush1.bf16.msra.mxu0 %v2191
    %2304 = vmatprep.subr.bf16.mxu0 %v2188
    %2305 = vmatpush1.bf16.msra.mxu0 %v2187
    %2306 = vmatprep.subr.bf16.mxu0 0
    %2307 = vmatpush2.bf16.msra.mxu0 0
    %2308 = vmatprep.subr.bf16.mxu0 0
    %2309 = vmatpush2.bf16.msra.mxu0 0
    %2310 = vmatprep.subr.bf16.mxu0 0
    %2311 = vmatpush2.bf16.msra.mxu0 0
    %2312 = vmatprep.subr.bf16.mxu0 0
    %2313 = vmatpush2.bf16.msra.mxu0 0
    %2314 = vmatprep.subr.bf16.mxu0 0
    %2315 = vmatpush2.bf16.msra.mxu0 0
    %2316 = vmatprep.subr.bf16.mxu0 0
    %2317 = vmatpush2.bf16.msra.mxu0 0
    %2318 = vmatprep.subr.bf16.mxu0 0
    %2319 = vmatpush2.bf16.msra.mxu0 0
    %2320 = vmatprep.subr.bf16.mxu0 0
    %2321 = vmatpush2.bf16.msra.mxu0 0
    %2322 = vmatprep.mubr.bf16.mxu0 0
    %2323 = vmatmul.mubr.bf16.gmra.mxu0 %v2033
    %v2324 = vpop.f32.mrf.mxu0
    %v2325 = vadd.f32 %v2080, %v2324
    %v2326 = vpop.f32.mrf.mxu0
    %v2327 = vadd.f32 %v2084, %v2326
    %v2328 = vpop.f32.mrf.mxu0
    %v2329 = vpop.f32.mrf.mxu0
    %2330 = vdwg.mxu0
    %v2331 = vmax.f32 %v2284, 0.0
    %v2332 = vmax.f32 %v2286, 0.0
    %v2333 = vmax.f32 %v2325, 0.0
    %v2334 = vmax.f32 %v2327, 0.0
    %v2335 = vpack.c.bf16 %v2331, %v2331
    %v2336 = vpack.c.bf16 %v2332, %v2332
    %v2337 = vpack.c.bf16 %v2333, %v2333
    %v2338 = vpack.c.bf16 %v2334, %v2334
    %v2339 = vld [vmem:[%s3 + $0xc0] sm:$0xf]
    %v2340 = vld [vmem:[%s3 + $0xc4] sm:$0xf]
    %v2341 = vld [vmem:[%s3 + $0xc8] sm:$0xf]
    %v2342 = vld [vmem:[%s3 + $0xcc] sm:$0xf]
    %v2343 = vld [vmem:[%s3 + $0xd0] sm:$0xf]
    %v2344 = vld [vmem:[%s3 + $0xd4] sm:$0xf]
    %v2345 = vld [vmem:[%s3 + $0xd8] sm:$0xf]
    %v2346 = vld [vmem:[%s3 + $0xdc] sm:$0xf]
    %v2347 = vld [vmem:[%s3 + $0xe0] sm:$0xf]
    %v2348 = vld [vmem:[%s3 + $0xe4] sm:$0xf]
    %v2349 = vld [vmem:[%s3 + $0xe8] sm:$0xf]
    %v2350 = vld [vmem:[%s3 + $0xec] sm:$0xf]
    %v2351 = vld [vmem:[%s3 + $0xf0] sm:$0xf]
    %v2352 = vld [vmem:[%s3 + $0xf4] sm:$0xf]
    %v2353 = vld [vmem:[%s3 + $0xf8] sm:$0xf]
    %v2354 = vld [vmem:[%s3 + $0xfc] sm:$0xf]
    %v2355 = vld [vmem:[%s3 + $0x100] sm:$0xf]
    %v2356 = vld [vmem:[%s3 + $0x104] sm:$0xf]
    %v2357 = vld [vmem:[%s3 + $0x108] sm:$0xf]
    %v2358 = vld [vmem:[%s3 + $0x10c] sm:$0xf]
    %v2359 = vld [vmem:[%s3 + $0x110] sm:$0xf]
    %v2360 = vld [vmem:[%s3 + $0x114] sm:$0xf]
    %v2361 = vld [vmem:[%s3 + $0x118] sm:$0xf]
    %v2362 = vld [vmem:[%s3 + $0x11c] sm:$0xf]
    %v2363 = vld [vmem:[%s3 + $0x120] sm:$0xf]
    %v2364 = vld [vmem:[%s3 + $0x124] sm:$0xf]
    %v2365 = vld [vmem:[%s3 + $0x128] sm:$0xf]
    %v2366 = vld [vmem:[%s3 + $0x12c] sm:$0xf]
    %v2367 = vld [vmem:[%s3 + $0x130] sm:$0xf]
    %v2368 = vld [vmem:[%s3 + $0x134] sm:$0xf]
    %v2369 = vld [vmem:[%s3 + $0x138] sm:$0xf]
    %v2370 = vld [vmem:[%s3 + $0x13c] sm:$0xf]
    %v2371 = vld [vmem:[%s3 + $0x140] sm:$0xf]
    %v2372 = vld [vmem:[%s3 + $0x144] sm:$0xf]
    %v2373 = vld [vmem:[%s3 + $0x148] sm:$0xf]
    %v2374 = vld [vmem:[%s3 + $0x14c] sm:$0xf]
    %v2375 = vld [vmem:[%s3 + $0x150] sm:$0xf]
    %v2376 = vld [vmem:[%s3 + $0x154] sm:$0xf]
    %v2377 = vld [vmem:[%s3 + $0x158] sm:$0xf]
    %v2378 = vld [vmem:[%s3 + $0x15c] sm:$0xf]
    %v2379 = vld [vmem:[%s3 + $0x160] sm:$0xf]
    %v2380 = vld [vmem:[%s3 + $0x164] sm:$0xf]
    %v2381 = vld [vmem:[%s3 + $0x168] sm:$0xf]
    %v2382 = vld [vmem:[%s3 + $0x16c] sm:$0xf]
    %v2383 = vld [vmem:[%s3 + $0x170] sm:$0xf]
    %v2384 = vld [vmem:[%s3 + $0x174] sm:$0xf]
    %v2385 = vld [vmem:[%s3 + $0x178] sm:$0xf]
    %v2386 = vld [vmem:[%s3 + $0x17c] sm:$0xf]
    %v2387 = vld [vmem:[%s3 + $0x180] sm:$0xf]
    %v2388 = vld [vmem:[%s3 + $0x184] sm:$0xf]
    %v2389 = vld [vmem:[%s3 + $0x188] sm:$0xf]
    %v2390 = vld [vmem:[%s3 + $0x18c] sm:$0xf]
    %v2391 = vld [vmem:[%s3 + $0x190] sm:$0xf]
    %v2392 = vld [vmem:[%s3 + $0x194] sm:$0xf]
    %v2393 = vld [vmem:[%s3 + $0x198] sm:$0xf]
    %v2394 = vld [vmem:[%s3 + $0x19c] sm:$0xf]
    %v2395 = vld [vmem:[%s3 + $0x1a0] sm:$0xf]
    %v2396 = vld [vmem:[%s3 + $0x1a4] sm:$0xf]
    %v2397 = vld [vmem:[%s3 + $0x1a8] sm:$0xf]
    %v2398 = vld [vmem:[%s3 + $0x1ac] sm:$0xf]
    %v2399 = vld [vmem:[%s3 + $0x1b0] sm:$0xf]
    %v2400 = vld [vmem:[%s3 + $0x1b4] sm:$0xf]
    %v2401 = vld [vmem:[%s3 + $0x1b8] sm:$0xf]
    %v2402 = vld [vmem:[%s3 + $0x1bc] sm:$0xf]
    %v2403 = vld [vmem:[%s7 + $0x7] ss:$0 sm:$0xff]
    %v2468 = vunpack.c.l.b16 %v2339
    %v2469 = vunpack.c.l.b16 %v2340
    %v2470 = vunpack.c.l.b16 %v2341
    %v2471 = vunpack.c.l.b16 %v2342
    %v2472 = vunpack.c.l.b16 %v2343
    %v2473 = vunpack.c.l.b16 %v2344
    %v2474 = vunpack.c.l.b16 %v2345
    %v2475 = vunpack.c.l.b16 %v2346
    %v2476 = vunpack.c.l.b16 %v2347
    %v2477 = vunpack.c.l.b16 %v2348
    %v2478 = vunpack.c.l.b16 %v2349
    %v2479 = vunpack.c.l.b16 %v2350
    %v2480 = vunpack.c.l.b16 %v2351
    %v2481 = vunpack.c.l.b16 %v2352
    %v2482 = vunpack.c.l.b16 %v2353
    %v2483 = vunpack.c.l.b16 %v2354
    %v2484 = vunpack.c.l.b16 %v2355
    %v2485 = vunpack.c.l.b16 %v2356
    %v2486 = vunpack.c.l.b16 %v2357
    %v2487 = vunpack.c.l.b16 %v2358
    %v2488 = vunpack.c.l.b16 %v2359
    %v2489 = vunpack.c.l.b16 %v2360
    %v2490 = vunpack.c.l.b16 %v2361
    %v2491 = vunpack.c.l.b16 %v2362
    %v2492 = vunpack.c.l.b16 %v2363
    %v2493 = vunpack.c.l.b16 %v2364
    %v2494 = vunpack.c.l.b16 %v2365
    %v2495 = vunpack.c.l.b16 %v2366
    %v2496 = vunpack.c.l.b16 %v2367
    %v2497 = vunpack.c.l.b16 %v2368
    %v2498 = vunpack.c.l.b16 %v2369
    %v2499 = vunpack.c.l.b16 %v2370
    %v2500 = vunpack.c.l.b16 %v2371
    %v2501 = vunpack.c.l.b16 %v2372
    %v2502 = vunpack.c.l.b16 %v2373
    %v2503 = vunpack.c.l.b16 %v2374
    %v2504 = vunpack.c.l.b16 %v2375
    %v2505 = vunpack.c.l.b16 %v2376
    %v2506 = vunpack.c.l.b16 %v2377
    %v2507 = vunpack.c.l.b16 %v2378
    %v2508 = vunpack.c.l.b16 %v2379
    %v2509 = vunpack.c.l.b16 %v2380
    %v2510 = vunpack.c.l.b16 %v2381
    %v2511 = vunpack.c.l.b16 %v2382
    %v2512 = vunpack.c.l.b16 %v2383
    %v2513 = vunpack.c.l.b16 %v2384
    %v2514 = vunpack.c.l.b16 %v2385
    %v2515 = vunpack.c.l.b16 %v2386
    %v2516 = vunpack.c.l.b16 %v2387
    %v2517 = vunpack.c.l.b16 %v2388
    %v2518 = vunpack.c.l.b16 %v2389
    %v2519 = vunpack.c.l.b16 %v2390
    %v2520 = vunpack.c.l.b16 %v2391
    %v2521 = vunpack.c.l.b16 %v2392
    %v2522 = vunpack.c.l.b16 %v2393
    %v2523 = vunpack.c.l.b16 %v2394
    %v2524 = vunpack.c.l.b16 %v2395
    %v2525 = vunpack.c.l.b16 %v2396
    %v2526 = vunpack.c.l.b16 %v2397
    %v2527 = vunpack.c.l.b16 %v2398
    %v2528 = vunpack.c.l.b16 %v2399
    %v2529 = vunpack.c.l.b16 %v2400
    %v2530 = vunpack.c.l.b16 %v2401
    %v2531 = vunpack.c.l.b16 %v2402
    %v2532 = vpack.c.b16 %v2469, %v2468
    %v2533 = vpack.c.b16 %v2471, %v2470
    %v2534 = vpack.c.b16 %v2473, %v2472
    %v2535 = vpack.c.b16 %v2475, %v2474
    %v2536 = vpack.c.b16 %v2477, %v2476
    %v2537 = vpack.c.b16 %v2479, %v2478
    %v2538 = vpack.c.b16 %v2481, %v2480
    %v2539 = vpack.c.b16 %v2483, %v2482
    %v2540 = vpack.c.b16 %v2485, %v2484
    %v2541 = vpack.c.b16 %v2487, %v2486
    %v2542 = vpack.c.b16 %v2489, %v2488
    %v2543 = vpack.c.b16 %v2491, %v2490
    %v2544 = vpack.c.b16 %v2493, %v2492
    %v2545 = vpack.c.b16 %v2495, %v2494
    %v2546 = vpack.c.b16 %v2497, %v2496
    %v2547 = vpack.c.b16 %v2499, %v2498
    %v2548 = vpack.c.b16 %v2501, %v2500
    %v2549 = vpack.c.b16 %v2503, %v2502
    %v2550 = vpack.c.b16 %v2505, %v2504
    %v2551 = vpack.c.b16 %v2507, %v2506
    %v2552 = vpack.c.b16 %v2509, %v2508
    %v2553 = vpack.c.b16 %v2511, %v2510
    %v2554 = vpack.c.b16 %v2513, %v2512
    %v2555 = vpack.c.b16 %v2515, %v2514
    %v2556 = vpack.c.b16 %v2517, %v2516
    %v2557 = vpack.c.b16 %v2519, %v2518
    %v2558 = vpack.c.b16 %v2521, %v2520
    %v2559 = vpack.c.b16 %v2523, %v2522
    %v2560 = vpack.c.b16 %v2525, %v2524
    %v2561 = vpack.c.b16 %v2527, %v2526
    %v2562 = vpack.c.b16 %v2529, %v2528
    %v2563 = vpack.c.b16 %v2531, %v2530
    %2596 = vmatprep.subr.bf16.mxu0 0
    %2597 = vmatpush1.bf16.msra.mxu0 %v2539
    %2598 = vmatprep.subr.bf16.mxu0 0
    %2599 = vmatpush1.bf16.msra.mxu0 %v2538
    %2600 = vmatprep.subr.bf16.mxu0 0
    %2601 = vmatpush1.bf16.msra.mxu0 %v2537
    %2602 = vmatprep.subr.bf16.mxu0 0
    %2603 = vmatpush1.bf16.msra.mxu0 %v2536
    %2604 = vmatprep.subr.bf16.mxu0 0
    %2605 = vmatpush1.bf16.msra.mxu0 %v2535
    %2606 = vmatprep.subr.bf16.mxu0 0
    %2607 = vmatpush1.bf16.msra.mxu0 %v2534
    %2608 = vmatprep.subr.bf16.mxu0 0
    %2609 = vmatpush1.bf16.msra.mxu0 %v2533
    %2610 = vmatprep.subr.bf16.mxu0 0
    %2611 = vmatpush1.bf16.msra.mxu0 %v2532
    %2612 = vmatprep.subr.bf16.mxu0 0
    %2613 = vmatpush2.bf16.msra.mxu0 %v2547
    %2614 = vmatprep.subr.bf16.mxu0 0
    %2615 = vmatpush2.bf16.msra.mxu0 %v2546
    %2616 = vmatprep.subr.bf16.mxu0 0
    %2617 = vmatpush2.bf16.msra.mxu0 %v2545
    %2618 = vmatprep.subr.bf16.mxu0 0
    %2619 = vmatpush2.bf16.msra.mxu0 %v2544
    %2620 = vmatprep.subr.bf16.mxu0 0
    %2621 = vmatpush2.bf16.msra.mxu0 %v2543
    %2622 = vmatprep.subr.bf16.mxu0 0
    %2623 = vmatpush2.bf16.msra.mxu0 %v2542
    %2624 = vmatprep.subr.bf16.mxu0 0
    %2625 = vmatpush2.bf16.msra.mxu0 %v2541
    %2626 = vmatprep.subr.bf16.mxu0 0
    %2627 = vmatpush2.bf16.msra.mxu0 %v2540
    %2628 = vmatprep.mubr.bf16.mxu0 %v2336
    %2629 = vmatmul.mubr.bf16.gmra.mxu0 %v2335
    %v2630 = vpop.f32.mrf.mxu0
    %v2631 = vadd.f32 %v2403, %v2630
    %v2632 = vpop.f32.mrf.mxu0
    %v2633 = vpop.f32.mrf.mxu0
    %v2634 = vpop.f32.mrf.mxu0
    %2635 = vdwg.mxu0
    %2636 = vmatprep.subr.bf16.mxu0 0
    %2637 = vmatpush1.bf16.msra.mxu0 %v2555
    %2638 = vmatprep.subr.bf16.mxu0 0
    %2639 = vmatpush1.bf16.msra.mxu0 %v2554
    %2640 = vmatprep.subr.bf16.mxu0 0
    %2641 = vmatpush1.bf16.msra.mxu0 %v2553
    %2642 = vmatprep.subr.bf16.mxu0 0
    %2643 = vmatpush1.bf16.msra.mxu0 %v2552
    %2644 = vmatprep.subr.bf16.mxu0 0
    %2645 = vmatpush1.bf16.msra.mxu0 %v2551
    %2646 = vmatprep.subr.bf16.mxu0 0
    %2647 = vmatpush1.bf16.msra.mxu0 %v2550
    %2648 = vmatprep.subr.bf16.mxu0 0
    %2649 = vmatpush1.bf16.msra.mxu0 %v2549
    %2650 = vmatprep.subr.bf16.mxu0 0
    %2651 = vmatpush1.bf16.msra.mxu0 %v2548
    %2652 = vmatprep.subr.bf16.mxu0 0
    %2653 = vmatpush2.bf16.msra.mxu0 %v2563
    %2654 = vmatprep.subr.bf16.mxu0 0
    %2655 = vmatpush2.bf16.msra.mxu0 %v2562
    %2656 = vmatprep.subr.bf16.mxu0 0
    %2657 = vmatpush2.bf16.msra.mxu0 %v2561
    %2658 = vmatprep.subr.bf16.mxu0 0
    %2659 = vmatpush2.bf16.msra.mxu0 %v2560
    %2660 = vmatprep.subr.bf16.mxu0 0
    %2661 = vmatpush2.bf16.msra.mxu0 %v2559
    %2662 = vmatprep.subr.bf16.mxu0 0
    %2663 = vmatpush2.bf16.msra.mxu0 %v2558
    %2664 = vmatprep.subr.bf16.mxu0 0
    %2665 = vmatpush2.bf16.msra.mxu0 %v2557
    %2666 = vmatprep.subr.bf16.mxu0 0
    %2667 = vmatpush2.bf16.msra.mxu0 %v2556
    %2668 = vmatprep.mubr.bf16.mxu0 %v2338
    %2669 = vmatmul.mubr.bf16.gmra.mxu0 %v2337
    %v2670 = vpop.f32.mrf.mxu0
    %v2671 = vadd.f32 %v2631, %v2670
    %v2672 = vpop.f32.mrf.mxu0
    %v2673 = vpop.f32.mrf.mxu0
    %v2674 = vpop.f32.mrf.mxu0
    %2675 = vdwg.mxu0
    %v2676 = vlaneseq
    %v2677 = vand.u32 %v2676, 127
    %vm2678 = vcmp.lt.s32.totalorder %v2677, 8
    %v2679 = vsel %vm2678, %v2671, -inf
    %2680 = vmax.xlane.f32.xlu0 %v2679
    %v2681 = vpop.xlane.xlu0 %2680
    %v2682 = vsub.f32 %v2671, %v2681
    %v2683 = vmul.f32 %v2682, 1.442695
    %v2684 = vpow.pop %v2683
    %v2685 = vsel %vm2678, %v2684, 0.0
    %2686 = vadd.xlane.f32.xlu0 %v2685
    %v2687 = vpop.xlane.xlu0 %2686
    %v2688 = vrcp.pop %v2687
    %v2689 = vmul.f32 1.0, %v2688
    %v2690 = vmul.f32 %v2685, %v2689
    %v2691 = vmax.f32 %v2671, 0.0
    %v2692 = vsub.f32 0.0, %v2691
    %v2693 = vmul.f32 %v2692, 1.442695
    %v2694 = vpow.pop %v2693
    %v2695 = vadd.f32 %v2694, 1.0
    %v2696 = vrcp.pop %v2695
    %v2697 = vstv %s113
    %v2698 = vmul.f32 %v2697, %v2696
    %vm2699 = vcmp.eq.s32.totalorder %v2677, 8
    %v2700 = vsel %vm2699, %v2698, 0.0
    %v2701 = vsel %vm2678, %v2690, %v2700
    %2702 = vst [vmem:[#allocation13] sm:$0xff] %v2701
    // Predicated region
    $region62: #{tpu_custom_call.1} parent=1 // pred_check
      _
    $region63: #{tpu_custom_call.1} parent=1 // pred_check_branch
      %2704 = sbr.rel (0) target = $region65
    $region64: #{tpu_custom_call.1} parent=1 // pred_region
      %s2706 = ssub.s32 128, 128
      %2707 = vsyncadd [#allocation4], %s2706
      %s2709 = sshll.u32 [#allocation13], 4
      %s2710 = int_to_ptr.vmem [resolvable:$true] %s2709
      %2712 = dma.vmem_to_hbm [thread:$0]  %s2710, 128, %s9, [#allocation4]
    $region65: #{tpu_custom_call.1} parent=1 // pred_fallthru
      _
    // Predicated region
    $region66: #{tpu_custom_call.1} parent=1 // pred_check
      _
    $region67: #{tpu_custom_call.1} parent=1 // pred_check_branch
      %2714 = sbr.rel (0) target = $region69
    $region68: #{tpu_custom_call.1} parent=1 // pred_region
      %2715 = dma.done [#allocation4], 128
    $region69: #{tpu_custom_call.1} parent=1 // pred_fallthru
      _
    %2716 = vsyncpa [#allocation3], 1
    %2717 = vsyncpa [#allocation7], 1
    %2718 = vsyncpa [#allocation10], 1
    %2719 = vsyncpa [#allocation4], 1
    %2720 = vsyncpa [#allocation5], 1

</llo_original>
